<compile_context>
chip_gen: v7x
topology: tpu7x:2x2x1
jax: 0.10.0
libtpu: 0.0.40
codegen_flags: <defaults>
</compile_context>

<pallas_src>
import jax
import jax.numpy as jnp
from jax.experimental import pallas as pl
from jax.experimental.pallas import tpu as pltpu

HIDDEN1 = 256
HIDDEN2 = 512


def _round_up(x, m):
    return ((x + m - 1) // m) * m


def _cdiv(a, b):
    return (a + b - 1) // b


# ---------------------------------------------------------------------------
# Kernel
# ---------------------------------------------------------------------------
def _decoder_kernel(z_ref, w1_ref, b1_ref, w2_ref, b2_ref, w3_ref, b3_ref, o_ref):
    # z arrives f32; cast to bf16 in-register (free on the VPU) for the MXU.
    z = z_ref[...].astype(jnp.bfloat16)

    # Layer 1: (tb, L)bf16 @ (L, 256)bf16 -> f32 acc, bias + relu in f32.
    h1 = jnp.dot(z, w1_ref[...], preferred_element_type=jnp.float32)
    h1 = jnp.maximum(h1 + b1_ref[...], 0.0)

    # Layer 2: (tb, 256)bf16 @ (256, 512)bf16 -> f32 acc.
    h2 = jnp.dot(h1.astype(jnp.bfloat16), w2_ref[...],
                 preferred_element_type=jnp.float32)
    h2 = jnp.maximum(h2 + b2_ref[...], 0.0)

    # Layer 3: (tb, 512)bf16 @ (512, D_pad)bf16 -> f32 acc.
    logits = jnp.dot(h2.astype(jnp.bfloat16), w3_ref[...],
                     preferred_element_type=jnp.float32)
    logits = logits + b3_ref[...]

    # sigmoid(x) = 0.5 * (tanh(x/2) + 1): single EUP transcendental per element
    # instead of exp + reciprocal.
    o_ref[...] = (0.5 * (jnp.tanh(0.5 * logits) + 1.0)).astype(o_ref.dtype)


# ---------------------------------------------------------------------------
# Wrapper
# ---------------------------------------------------------------------------
def prepare_decoder_params(w1, b1, w2, b2, w3, b3):
    """One-time prep: bf16 weights, f32 biases as (1, N), W3/b3 lane-padded.

    Call once and reuse the result across decoder_forward() calls so the
    pad/cast HBM passes are not repaid per call.
    Weights are expected pre-transposed as (fan_in, fan_out).
    """
    d_out = int(w3.shape[1])
    d_pad = _round_up(max(d_out, 128), 128)
    if d_pad != d_out:
        w3 = jnp.pad(w3, ((0, 0), (0, d_pad - d_out)))
        b3 = jnp.pad(b3, ((0, d_pad - d_out),))
    return {
        "w1": w1.astype(jnp.bfloat16),
        "b1": b1.reshape(1, HIDDEN1).astype(jnp.float32),
        "w2": w2.astype(jnp.bfloat16),
        "b2": b2.reshape(1, HIDDEN2).astype(jnp.float32),
        "w3": w3.astype(jnp.bfloat16),
        "b3": b3.reshape(1, d_pad).astype(jnp.float32),
        "d_out": d_out,
        "d_pad": d_pad,
    }


def _choose_tiling(B, tile_b):
    """Pick (tb, B_pad, n_tiles): minimal padding, tb % 16 == 0, and >= 2 grid
    steps when the batch is big enough (so v7x can use both TensorCores and
    the DMA pipeline has something to overlap)."""
    n_tiles = _cdiv(B, tile_b)
    if n_tiles == 1 and B >= 32:
        n_tiles = 2
    tb = _round_up(_cdiv(B, n_tiles), 16)
    b_pad = n_tiles * tb
    return tb, b_pad, n_tiles


def decoder_forward(z, params, *, tile_b=512, out_dtype=jnp.float32,
                    slice_output=True):
    """Fused 3-layer MLP decoder as one Pallas kernel.

    z      : (B, latent_dim) f32.
    params : result of prepare_decoder_params().
    Returns (B, output_dim) in `out_dtype` (or the padded (B_pad, D_pad)
    buffer when slice_output=False, for fusion into a downstream consumer).
    """
    B, L = z.shape
    d_out = params["d_out"]
    d_pad = params["d_pad"]

    tb, b_pad, n_tiles = _choose_tiling(B, tile_b)
    z_p = z if b_pad == B else jnp.pad(z, ((0, b_pad - B), (0, 0)))

    flops = 2 * b_pad * (L * HIDDEN1 + HIDDEN1 * HIDDEN2 + HIDDEN2 * d_pad)
    transcendentals = b_pad * d_pad  # one tanh per output element
    bytes_accessed = (
        b_pad * L * 4                                           # z (f32 in)
        + 2 * (L * HIDDEN1 + HIDDEN1 * HIDDEN2 + HIDDEN2 * d_pad)  # bf16 weights
        + 4 * (HIDDEN1 + HIDDEN2 + d_pad)                       # f32 biases
        + b_pad * d_pad * jnp.dtype(out_dtype).itemsize         # output
    )

    out = pl.pallas_call(
        _decoder_kernel,
        out_shape=jax.ShapeDtypeStruct((b_pad, d_pad), out_dtype),
        grid_spec=pltpu.PrefetchScalarGridSpec(
            num_scalar_prefetch=0,
            grid=(n_tiles,),
            in_specs=[
                pl.BlockSpec((tb, L), lambda i: (i, 0)),             # z tile (f32)
                pl.BlockSpec((L, HIDDEN1), lambda i: (0, 0)),        # W1 (full)
                pl.BlockSpec((1, HIDDEN1), lambda i: (0, 0)),        # b1
                pl.BlockSpec((HIDDEN1, HIDDEN2), lambda i: (0, 0)),  # W2 (full)
                pl.BlockSpec((1, HIDDEN2), lambda i: (0, 0)),        # b2
                pl.BlockSpec((HIDDEN2, d_pad), lambda i: (0, 0)),    # W3 (padded)
                pl.BlockSpec((1, d_pad), lambda i: (0, 0)),          # b3 (padded)
            ],
            out_specs=pl.BlockSpec((tb, d_pad), lambda i: (i, 0)),
        ),
        compiler_params=pltpu.CompilerParams(
            dimension_semantics=("parallel",),  # shards batch tiles across TCs
        ),
        cost_estimate=pl.CostEstimate(
            flops=flops,
            transcendentals=transcendentals,
            bytes_accessed=bytes_accessed,
        ),
    )(z_p, params["w1"], params["b1"], params["w2"], params["b2"],
      params["w3"], params["b3"])

    if slice_output and (b_pad != B or d_pad != d_out):
        # Padded rows/cols hold garbage / sigmoid(0)=0.5 -- slice them off.
        # In real use, keep this inside the caller's jit (or pass
        # slice_output=False) so the copy fuses into the consumer.
        out = out[:B, :d_out]
    return out


# ---------------------------------------------------------------------------
# Reference + demo
# ---------------------------------------------------------------------------
def init_linear(key, fan_in, fan_out):
    """PyTorch nn.Linear default init: U(-1/sqrt(fan_in), 1/sqrt(fan_in)).
    Weight returned pre-transposed as (fan_in, fan_out)."""
    kw, kb = jax.random.split(key)
    bound = 1.0 / jnp.sqrt(jnp.float32(fan_in))
    w = jax.random.uniform(kw, (fan_in, fan_out), jnp.float32, -bound, bound)
    b = jax.random.uniform(kb, (fan_out,), jnp.float32, -bound, bound)
    return w, b


def reference_forward(z, w1, b1, w2, b2, w3, b3):
    h1 = jax.nn.relu(z @ w1 + b1)
    h2 = jax.nn.relu(h1 @ w2 + b2)
    return jax.nn.sigmoid(h2 @ w3 + b3)


if __name__ == "__main__":
    latent_dim = 32
    output_dim = 784  # MNIST-like width: exercises the lane-padding path

    key = jax.random.PRNGKey(0)
    kz1, kz2, k1, k2, k3 = jax.random.split(key, 5)

    w1, b1 = init_linear(k1, latent_dim, HIDDEN1)
    w2, b2 = init_linear(k2, HIDDEN1, HIDDEN2)
    w3, b3 = init_linear(k3, HIDDEN2, output_dim)
    params = prepare_decoder_params(w1, b1, w2, b2, w3, b3)

    # Config A: tiny batch (single-tile path, tb rounded to 16).
    z_a = jax.random.normal(kz1, (16, latent_dim), jnp.float32)
    out_a = jax.block_until_ready(decoder_forward(z_a, params))
    ref_a = reference_forward(z_a, w1, b1, w2, b2, w3, b3)
    assert out_a.shape == (16, output_dim)
    assert jnp.allclose(out_a, ref_a, atol=1e-2, rtol=0.0), "config A mismatch"

    # Config A, bf16 output path (the v6e HBM-write-bound fix).
    out_a_bf = jax.block_until_ready(
        decoder_forward(z_a, params, out_dtype=jnp.bfloat16))
    assert out_a_bf.dtype == jnp.bfloat16
    assert jnp.allclose(out_a_bf.astype(jnp.float32), ref_a,
                        atol=2e-2, rtol=0.0), "config A (bf16 out) mismatch"

    # Config B: awkward batch (300) -> two balanced 160-row tiles, minimal
    # padding, parallel grid for the two v7x TensorCores.
    z_b = jax.random.normal(kz2, (300, latent_dim), jnp.float32)
    out_b = jax.block_until_ready(decoder_forward(z_b, params, tile_b=512))
    ref_b = reference_forward(z_b, w1, b1, w2, b2, w3, b3)
    assert out_b.shape == (300, output_dim)
    assert jnp.allclose(out_b, ref_b, atol=1e-2, rtol=0.0), "config B mismatch"

    print("KERNEL_OK")
</pallas_src>

<mosaic_0001>
module attributes {stable_mosaic.version = 11 : i64} {
  func.func @_decoder_kernel(%arg0: i32, %arg1: memref<16x32xf32, #tpu.memory_space<vmem>>, %arg2: memref<32x256xbf16, #tpu.memory_space<vmem>>, %arg3: memref<1x256xf32, #tpu.memory_space<vmem>>, %arg4: memref<256x512xbf16, #tpu.memory_space<vmem>>, %arg5: memref<1x512xf32, #tpu.memory_space<vmem>>, %arg6: memref<512x896xbf16, #tpu.memory_space<vmem>>, %arg7: memref<1x896xf32, #tpu.memory_space<vmem>>, %arg8: memref<16x896xf32, #tpu.memory_space<vmem>>) attributes {dimension_semantics = [#tpu.dimension_semantics<parallel>], iteration_bounds = array<i64: 1>, scalar_prefetch = 0 : i64, scratch_operands = 0 : i64, tpu.core_type = #tpu.core_type<tc>, window_params = [{transform_indices = @transform_0, window_bounds = array<i64: 16, 32>}, {pipeline_mode = #tpu.pipeline_mode<synchronous>, transform_indices = @transform_1, window_bounds = array<i64: 32, 256>}, {pipeline_mode = #tpu.pipeline_mode<synchronous>, transform_indices = @transform_2, window_bounds = array<i64: 1, 256>}, {pipeline_mode = #tpu.pipeline_mode<synchronous>, transform_indices = @transform_3, window_bounds = array<i64: 256, 512>}, {pipeline_mode = #tpu.pipeline_mode<synchronous>, transform_indices = @transform_4, window_bounds = array<i64: 1, 512>}, {pipeline_mode = #tpu.pipeline_mode<synchronous>, transform_indices = @transform_5, window_bounds = array<i64: 512, 896>}, {pipeline_mode = #tpu.pipeline_mode<synchronous>, transform_indices = @transform_6, window_bounds = array<i64: 1, 896>}, {transform_indices = @transform_7, window_bounds = array<i64: 16, 896>}]} {
    %c0 = arith.constant 0 : index
    %c0_0 = arith.constant 0 : index
    %0 = vector.load %arg1[%c0, %c0_0] : memref<16x32xf32, #tpu.memory_space<vmem>>, vector<16x32xf32>
    %1 = arith.truncf %0 : vector<16x32xf32> to vector<16x32xbf16>
    %c0_1 = arith.constant 0 : index
    %c0_2 = arith.constant 0 : index
    %2 = vector.load %arg2[%c0_1, %c0_2] : memref<32x256xbf16, #tpu.memory_space<vmem>>, vector<32x256xbf16>
    %cst = arith.constant dense<0.000000e+00> : vector<16x256xf32>
    %3 = tpu.matmul %1, %2, %cst {dimension_numbers = #tpu.dot_dimension_numbers<[1], [0], [0], [1], [0, 0, 1, 1], [], []>} : vector<16x32xbf16>, vector<32x256xbf16>, vector<16x256xf32> -> vector<16x256xf32>
    %c0_3 = arith.constant 0 : index
    %c0_4 = arith.constant 0 : index
    %4 = vector.load %arg3[%c0_3, %c0_4] : memref<1x256xf32, #tpu.memory_space<vmem>>, vector<1x256xf32>
    %5 = vector.broadcast %4 : vector<1x256xf32> to vector<16x256xf32>
    %6 = arith.addf %3, %5 : vector<16x256xf32>
    %cst_5 = arith.constant 0.000000e+00 : f32
    %7 = vector.broadcast %cst_5 : f32 to vector<16x256xf32>
    %8 = arith.maximumf %6, %7 : vector<16x256xf32>
    %9 = arith.truncf %8 : vector<16x256xf32> to vector<16x256xbf16>
    %c0_6 = arith.constant 0 : index
    %c0_7 = arith.constant 0 : index
    %10 = vector.load %arg4[%c0_6, %c0_7] : memref<256x512xbf16, #tpu.memory_space<vmem>>, vector<256x512xbf16>
    %cst_8 = arith.constant dense<0.000000e+00> : vector<16x512xf32>
    %11 = tpu.matmul %9, %10, %cst_8 {dimension_numbers = #tpu.dot_dimension_numbers<[1], [0], [0], [1], [0, 0, 1, 1], [], []>} : vector<16x256xbf16>, vector<256x512xbf16>, vector<16x512xf32> -> vector<16x512xf32>
    %c0_9 = arith.constant 0 : index
    %c0_10 = arith.constant 0 : index
    %12 = vector.load %arg5[%c0_9, %c0_10] : memref<1x512xf32, #tpu.memory_space<vmem>>, vector<1x512xf32>
    %13 = vector.broadcast %12 : vector<1x512xf32> to vector<16x512xf32>
    %14 = arith.addf %11, %13 : vector<16x512xf32>
    %cst_11 = arith.constant 0.000000e+00 : f32
    %15 = vector.broadcast %cst_11 : f32 to vector<16x512xf32>
    %16 = arith.maximumf %14, %15 : vector<16x512xf32>
    %17 = arith.truncf %16 : vector<16x512xf32> to vector<16x512xbf16>
    %c0_12 = arith.constant 0 : index
    %c0_13 = arith.constant 0 : index
    %18 = vector.load %arg6[%c0_12, %c0_13] : memref<512x896xbf16, #tpu.memory_space<vmem>>, vector<512x896xbf16>
    %cst_14 = arith.constant dense<0.000000e+00> : vector<16x896xf32>
    %19 = tpu.matmul %17, %18, %cst_14 {dimension_numbers = #tpu.dot_dimension_numbers<[1], [0], [0], [1], [0, 0, 1, 1], [], []>} : vector<16x512xbf16>, vector<512x896xbf16>, vector<16x896xf32> -> vector<16x896xf32>
    %c0_15 = arith.constant 0 : index
    %c0_16 = arith.constant 0 : index
    %20 = vector.load %arg7[%c0_15, %c0_16] : memref<1x896xf32, #tpu.memory_space<vmem>>, vector<1x896xf32>
    %21 = vector.broadcast %20 : vector<1x896xf32> to vector<16x896xf32>
    %22 = arith.addf %19, %21 : vector<16x896xf32>
    %cst_17 = arith.constant 5.000000e-01 : f32
    %23 = vector.broadcast %cst_17 : f32 to vector<16x896xf32>
    %24 = arith.mulf %23, %22 : vector<16x896xf32>
    %25 = math.tanh %24 : vector<16x896xf32>
    %cst_18 = arith.constant 1.000000e+00 : f32
    %26 = vector.broadcast %cst_18 : f32 to vector<16x896xf32>
    %27 = arith.addf %25, %26 : vector<16x896xf32>
    %cst_19 = arith.constant 5.000000e-01 : f32
    %28 = vector.broadcast %cst_19 : f32 to vector<16x896xf32>
    %29 = arith.mulf %28, %27 : vector<16x896xf32>
    %c0_20 = arith.constant 0 : index
    %c0_21 = arith.constant 0 : index
    %30 = vector.load %arg8[%c0_20, %c0_21] : memref<16x896xf32, #tpu.memory_space<vmem>>, vector<16x896xf32>
    tpu.vector_store %arg8[%c0_20, %c0_21], %29 {strides = array<i32>} : memref<16x896xf32, #tpu.memory_space<vmem>>, vector<16x896xf32>,
    return
  }
  func.func @transform_0(%arg0: i32) -> (i32, i32) {
    %c0_i32 = arith.constant 0 : i32
    %c0_i32_0 = arith.constant 0 : i32
    return %arg0, %c0_i32 : i32, i32
  }
  func.func @transform_1(%arg0: i32) -> (i32, i32) {
    %c0_i32 = arith.constant 0 : i32
    %c0_i32_0 = arith.constant 0 : i32
    %c0_i32_1 = arith.constant 0 : i32
    return %c0_i32, %c0_i32_0 : i32, i32
  }
  func.func @transform_2(%arg0: i32) -> (i32, i32) {
    %c0_i32 = arith.constant 0 : i32
    %c0_i32_0 = arith.constant 0 : i32
    %c0_i32_1 = arith.constant 0 : i32
    return %c0_i32, %c0_i32_0 : i32, i32
  }
  func.func @transform_3(%arg0: i32) -> (i32, i32) {
    %c0_i32 = arith.constant 0 : i32
    %c0_i32_0 = arith.constant 0 : i32
    %c0_i32_1 = arith.constant 0 : i32
    return %c0_i32, %c0_i32_0 : i32, i32
  }
  func.func @transform_4(%arg0: i32) -> (i32, i32) {
    %c0_i32 = arith.constant 0 : i32
    %c0_i32_0 = arith.constant 0 : i32
    %c0_i32_1 = arith.constant 0 : i32
    return %c0_i32, %c0_i32_0 : i32, i32
  }
  func.func @transform_5(%arg0: i32) -> (i32, i32) {
    %c0_i32 = arith.constant 0 : i32
    %c0_i32_0 = arith.constant 0 : i32
    %c0_i32_1 = arith.constant 0 : i32
    return %c0_i32, %c0_i32_0 : i32, i32
  }
  func.func @transform_6(%arg0: i32) -> (i32, i32) {
    %c0_i32 = arith.constant 0 : i32
    %c0_i32_0 = arith.constant 0 : i32
    %c0_i32_1 = arith.constant 0 : i32
    return %c0_i32, %c0_i32_0 : i32, i32
  }
  func.func @transform_7(%arg0: i32) -> (i32, i32) {
    %c0_i32 = arith.constant 0 : i32
    %c0_i32_0 = arith.constant 0 : i32
    return %arg0, %c0_i32 : i32, i32
  }
}

</mosaic_0001>

<llo_original>
// kernel: tpu_custom_call.1
$region0: #{tpu_custom_call.1}
  #allocation0 [shape = 'u32[]', space=smem, size = 0x4, offset = 0x4, fixed_abs, tag = 'smem constant byte address 0x4 - core index']
  #allocation1 [shape = 'u32[144,128]{1,0:T(1,128)}', space=vmem, size = 0x12000, scoped, tag = 'internal scratch']
  %s0 = inlined_call_operand.hbm [shape: f32[16,32], index: 0, kind: input, shape index: {}]
  %s1 = inlined_call_operand.hbm [shape: bf16[32,256], index: 1, kind: input, shape index: {}]
  %s2 = inlined_call_operand.vmem [shape: f32[1,256], index: 2, kind: input, shape index: {}]
  %s3 = inlined_call_operand.hbm [shape: bf16[256,512], index: 3, kind: input, shape index: {}]
  %s4 = inlined_call_operand.vmem [shape: f32[1,512], index: 4, kind: input, shape index: {}]
  %s5 = inlined_call_operand.hbm [shape: bf16[512,896], index: 5, kind: input, shape index: {}]
  %s6 = inlined_call_operand.vmem [shape: f32[1,896], index: 6, kind: input, shape index: {}]
  %s7 = inlined_call_operand.hbm [shape: f32[16,896], index: 7, kind: output, shape index: {}]
  %s8 = sld [smem:[#allocation0]]
  $region54: #{tpu_custom_call.1} parent=0
    _
  %s10 = ssub.s32 1, %s8
  %s11 = scalar_select 0, %s10, %s8
  $region1: #{tpu_custom_call.1} parent=0
    #allocation2 [shape = 'u8[8192]{0}', space=vmem, size = 0x2000, scoped, tag = 'input window, operand 0, single buffered']
    #allocation3 [shape = 's32[1]{0}', space=sflag, size = 0x4, scoped, tag = 'scoped memory for tpu_custom_call.1']
    #allocation4 [shape = 's32[1]{0}', space=sflag, size = 0x4, scoped, tag = 'scoped memory for tpu_custom_call.1']
    #allocation5 [shape = 'u8[16384]{0}', space=vmem, size = 0x4000, scoped, tag = 'input window, operand 1, single buffered']
    #allocation6 [shape = 's32[1]{0}', space=sflag, size = 0x4, scoped, tag = 'scoped memory for tpu_custom_call.1']
    #allocation7 [shape = 'u8[262144]{0}', space=vmem, size = 0x40000, scoped, tag = 'input window, operand 3, single buffered']
    #allocation8 [shape = 'u8[917504]{0}', space=vmem, size = 0xe0000, scoped, tag = 'input window, operand 5, single buffered']
    #allocation9 [shape = 's32[1]{0}', space=sflag, size = 0x4, scoped, tag = 'scoped memory for tpu_custom_call.1']
    #allocation10 [shape = 'u8[57344]{0}', space=vmem, size = 0xe000, scoped, tag = 'output window, operand 0, single buffered']
    %12 = vsyncpa [#allocation3], 0
    %13 = vsyncpa [#allocation6], 0
    %14 = vsyncpa [#allocation9], 0
    %15 = vsyncpa [#allocation4], 0
    // Predicated region
    $region2: #{tpu_custom_call.1} parent=1 // pred_check
      _
    $region3: #{tpu_custom_call.1} parent=1 // pred_check_branch
      %17 = sbr.rel (0) target = $region5
    $region4: #{tpu_custom_call.1} parent=1 // pred_region
      %s19 = ssub.s32 256, 256
      %20 = vsyncadd [#allocation3], %s19
      %s21 = sshll.u32 [#allocation2], 4
      %s22 = int_to_ptr.vmem [resolvable:$true] %s21
      %27 = dma.hbm_to_vmem [thread:$0]  %s0, 256, %s22, [#allocation3], 128, 128, 8
    $region5: #{tpu_custom_call.1} parent=1 // pred_fallthru
      _
    // Predicated region
    $region6: #{tpu_custom_call.1} parent=1 // pred_check
      _
    $region7: #{tpu_custom_call.1} parent=1 // pred_check_branch
      %29 = sbr.rel (0) target = $region9
    $region8: #{tpu_custom_call.1} parent=1 // pred_region
      %s31 = ssub.s32 512, 512
      %32 = vsyncadd [#allocation6], %s31
      %s33 = sshll.u32 [#allocation5], 4
      %s34 = int_to_ptr.vmem [resolvable:$true] %s33
      %39 = dma.hbm_to_vmem [thread:$0]  %s1, 512, %s34, [#allocation6], 128, 128, 8
    $region9: #{tpu_custom_call.1} parent=1 // pred_fallthru
      _
    // Predicated region
    $region10: #{tpu_custom_call.1} parent=1 // pred_check
      _
    $region11: #{tpu_custom_call.1} parent=1 // pred_check_branch
      %41 = sbr.rel (0) target = $region13
    $region12: #{tpu_custom_call.1} parent=1 // pred_region
      _
    $region13: #{tpu_custom_call.1} parent=1 // pred_fallthru
      _
    // Predicated region
    $region14: #{tpu_custom_call.1} parent=1 // pred_check
      _
    $region15: #{tpu_custom_call.1} parent=1 // pred_check_branch
      %43 = sbr.rel (0) target = $region17
    $region16: #{tpu_custom_call.1} parent=1 // pred_region
      %s45 = ssub.s32 8192, 8192
      %46 = vsyncadd [#allocation6], %s45
      %s47 = sshll.u32 [#allocation7], 4
      %s48 = int_to_ptr.vmem [resolvable:$true] %s47
      %53 = dma.hbm_to_vmem [thread:$0]  %s3, 8192, %s48, [#allocation6], 256, 256, 16
    $region17: #{tpu_custom_call.1} parent=1 // pred_fallthru
      _
    // Predicated region
    $region18: #{tpu_custom_call.1} parent=1 // pred_check
      _
    $region19: #{tpu_custom_call.1} parent=1 // pred_check_branch
      %55 = sbr.rel (0) target = $region21
    $region20: #{tpu_custom_call.1} parent=1 // pred_region
      _
    $region21: #{tpu_custom_call.1} parent=1 // pred_fallthru
      _
    // Predicated region
    $region22: #{tpu_custom_call.1} parent=1 // pred_check
      _
    $region23: #{tpu_custom_call.1} parent=1 // pred_check_branch
      %57 = sbr.rel (0) target = $region25
    $region24: #{tpu_custom_call.1} parent=1 // pred_region
      %s59 = ssub.s32 28672, 28672
      %60 = vsyncadd [#allocation9], %s59
      %s61 = sshll.u32 [#allocation8], 4
      %s62 = int_to_ptr.vmem [resolvable:$true] %s61
      %67 = dma.hbm_to_vmem [thread:$0]  %s5, 28672, %s62, [#allocation9], 448, 448, 28
    $region25: #{tpu_custom_call.1} parent=1 // pred_fallthru
      _
    // Predicated region
    $region26: #{tpu_custom_call.1} parent=1 // pred_check
      _
    $region27: #{tpu_custom_call.1} parent=1 // pred_check_branch
      %69 = sbr.rel (0) target = $region29
    $region28: #{tpu_custom_call.1} parent=1 // pred_region
      _
    $region29: #{tpu_custom_call.1} parent=1 // pred_fallthru
      _
    // Predicated region
    $region30: #{tpu_custom_call.1} parent=1 // pred_check
      _
    $region31: #{tpu_custom_call.1} parent=1 // pred_check_branch
      %71 = sbr.rel (0) target = $region33
    $region32: #{tpu_custom_call.1} parent=1 // pred_region
      %72 = dma.done [#allocation3], 256
    $region33: #{tpu_custom_call.1} parent=1 // pred_fallthru
      _
    // Predicated region
    $region34: #{tpu_custom_call.1} parent=1 // pred_check
      _
    $region35: #{tpu_custom_call.1} parent=1 // pred_check_branch
      %74 = sbr.rel (0) target = $region37
    $region36: #{tpu_custom_call.1} parent=1 // pred_region
      %75 = dma.done [#allocation6], 512
    $region37: #{tpu_custom_call.1} parent=1 // pred_fallthru
      _
    // Predicated region
    $region38: #{tpu_custom_call.1} parent=1 // pred_check
      _
    $region39: #{tpu_custom_call.1} parent=1 // pred_check_branch
      %77 = sbr.rel (0) target = $region41
    $region40: #{tpu_custom_call.1} parent=1 // pred_region
      %78 = dma.done [#allocation6], 8192
    $region41: #{tpu_custom_call.1} parent=1 // pred_fallthru
      _
    // Predicated region
    $region42: #{tpu_custom_call.1} parent=1 // pred_check
      _
    $region43: #{tpu_custom_call.1} parent=1 // pred_check_branch
      %80 = sbr.rel (0) target = $region45
    $region44: #{tpu_custom_call.1} parent=1 // pred_region
      %81 = dma.done [#allocation9], 28672
    $region45: #{tpu_custom_call.1} parent=1 // pred_fallthru
      _
    %v83 = vld [vmem:[#allocation2] sm:$0xff]
    %v84 = vld [vmem:[#allocation2 + $0x8] sm:$0xff]
    %v85 = vpack.c.bf16 %v84, %v83
    %v86 = vld [vmem:[#allocation5] sm:$0xff]
    %v87 = vld [vmem:[#allocation5 + $0x8] sm:$0xff]
    %v88 = vld [vmem:[#allocation5 + $0x10] sm:$0xff]
    %v89 = vld [vmem:[#allocation5 + $0x18] sm:$0xff]
    %v90 = vld [vmem:[%s2] sm:$0x3]
    %v92 = vlaneseq
    %v93 = vshrl.u32 %v92, 7
    %v94 = vsub.s32 0, %v93
    %v95 = vrot.slane %v90, %v94
    %v96 = vlaneseq
    %v97 = vshrl.u32 %v96, 7
    %v98 = vsub.s32 1, %v97
    %v99 = vrot.slane %v90, %v98
    %v106 = vunpack.c.l.b16 %v86
    %v107 = vunpack.c.h.b16 %v86
    %v108 = vunpack.c.l.b16 %v87
    %v109 = vunpack.c.h.b16 %v87
    %v110 = vunpack.c.l.b16 %v88
    %v111 = vunpack.c.h.b16 %v88
    %v112 = vunpack.c.l.b16 %v89
    %v113 = vunpack.c.h.b16 %v89
    %v114 = vpack.c.b16 %v108, %v106
    %v115 = vpack.c.b16 %v109, %v107
    %v116 = vpack.c.b16 %v112, %v110
    %v117 = vpack.c.b16 %v113, %v111
    %vm122 = vcmask 261120
    %v124 = vsel %vm122, %v85, 0
    %126 = vmatprep.subr.bf16.mxu0 %v115
    %127 = vmatpush1.bf16.msra.mxu0 %v114
    %128 = vmatprep.subr.bf16.mxu0 %v117
    %129 = vmatpush1.bf16.msra.mxu0 %v116
    %130 = vmatprep.subr.bf16.mxu0 0
    %131 = vmatpush1.bf16.msra.mxu0 0
    %132 = vmatprep.subr.bf16.mxu0 0
    %133 = vmatpush1.bf16.msra.mxu0 0
    %134 = vmatprep.subr.bf16.mxu0 0
    %135 = vmatpush1.bf16.msra.mxu0 0
    %136 = vmatprep.subr.bf16.mxu0 0
    %137 = vmatpush1.bf16.msra.mxu0 0
    %138 = vmatprep.subr.bf16.mxu0 0
    %139 = vmatpush1.bf16.msra.mxu0 0
    %140 = vmatprep.subr.bf16.mxu0 0
    %141 = vmatpush1.bf16.msra.mxu0 0
    %142 = vmatprep.subr.bf16.mxu0 0
    %143 = vmatpush1.bf16.msra.mxu0 0
    %144 = vmatprep.subr.bf16.mxu0 0
    %145 = vmatpush1.bf16.msra.mxu0 0
    %146 = vmatprep.subr.bf16.mxu0 0
    %147 = vmatpush1.bf16.msra.mxu0 0
    %148 = vmatprep.subr.bf16.mxu0 0
    %149 = vmatpush1.bf16.msra.mxu0 0
    %150 = vmatprep.subr.bf16.mxu0 0
    %151 = vmatpush1.bf16.msra.mxu0 0
    %152 = vmatprep.subr.bf16.mxu0 0
    %153 = vmatpush1.bf16.msra.mxu0 0
    %154 = vmatprep.subr.bf16.mxu0 0
    %155 = vmatpush1.bf16.msra.mxu0 0
    %156 = vmatprep.subr.bf16.mxu0 0
    %157 = vmatpush1.bf16.msra.mxu0 0
    %158 = vmatprep.mubr.bf16.mxu0 0
    %159 = vmatmul.mubr.bf16.gmra.mrb[0].mxu0 %v124
    %v160 = vpop.f32.mrb[0].mxu0
    %v161 = vadd.f32 %v95, %v160
    %v162 = vpop.f32.mrb[0].mxu0
    %v163 = vadd.f32 %v99, %v162
    %v164 = vpop.f32.mrb[0].mxu0
    %v165 = vadd.f32 %v95, %v164
    %v166 = vpop.f32.mrb[0].mxu0
    %v167 = vadd.f32 %v99, %v166
    %168 = vdwg.mxu0
    %v169 = vmax.f32 %v161, 0.0
    %v170 = vmax.f32 %v163, 0.0
    %v171 = vmax.f32 %v165, 0.0
    %v172 = vmax.f32 %v167, 0.0
    %v173 = vpack.c.bf16 %v171, %v169
    %v174 = vpack.c.bf16 %v172, %v170
    %v175 = vld [vmem:[#allocation7] sm:$0xff]
    %v176 = vld [vmem:[#allocation7 + $0x8] sm:$0xff]
    %v177 = vld [vmem:[#allocation7 + $0x10] sm:$0xff]
    %v178 = vld [vmem:[#allocation7 + $0x18] sm:$0xff]
    %v179 = vld [vmem:[#allocation7 + $0x20] sm:$0xff]
    %v180 = vld [vmem:[#allocation7 + $0x28] sm:$0xff]
    %v181 = vld [vmem:[#allocation7 + $0x30] sm:$0xff]
    %v182 = vld [vmem:[#allocation7 + $0x38] sm:$0xff]
    %v183 = vld [vmem:[#allocation7 + $0x40] sm:$0xff]
    %v184 = vld [vmem:[#allocation7 + $0x48] sm:$0xff]
    %v185 = vld [vmem:[#allocation7 + $0x50] sm:$0xff]
    %v186 = vld [vmem:[#allocation7 + $0x58] sm:$0xff]
    %v187 = vld [vmem:[#allocation7 + $0x60] sm:$0xff]
    %v188 = vld [vmem:[#allocation7 + $0x68] sm:$0xff]
    %v189 = vld [vmem:[#allocation7 + $0x70] sm:$0xff]
    %v190 = vld [vmem:[#allocation7 + $0x78] sm:$0xff]
    %v191 = vld [vmem:[#allocation7 + $0x80] sm:$0xff]
    %v192 = vld [vmem:[#allocation7 + $0x88] sm:$0xff]
    %v193 = vld [vmem:[#allocation7 + $0x90] sm:$0xff]
    %v194 = vld [vmem:[#allocation7 + $0x98] sm:$0xff]
    %v195 = vld [vmem:[#allocation7 + $0xa0] sm:$0xff]
    %v196 = vld [vmem:[#allocation7 + $0xa8] sm:$0xff]
    %v197 = vld [vmem:[#allocation7 + $0xb0] sm:$0xff]
    %v198 = vld [vmem:[#allocation7 + $0xb8] sm:$0xff]
    %v199 = vld [vmem:[#allocation7 + $0xc0] sm:$0xff]
    %v200 = vld [vmem:[#allocation7 + $0xc8] sm:$0xff]
    %v201 = vld [vmem:[#allocation7 + $0xd0] sm:$0xff]
    %v202 = vld [vmem:[#allocation7 + $0xd8] sm:$0xff]
    %v203 = vld [vmem:[#allocation7 + $0xe0] sm:$0xff]
    %v204 = vld [vmem:[#allocation7 + $0xe8] sm:$0xff]
    %v205 = vld [vmem:[#allocation7 + $0xf0] sm:$0xff]
    %v206 = vld [vmem:[#allocation7 + $0xf8] sm:$0xff]
    %v207 = vld [vmem:[#allocation7 + $0x100] sm:$0xff]
    %v208 = vld [vmem:[#allocation7 + $0x108] sm:$0xff]
    %v209 = vld [vmem:[#allocation7 + $0x110] sm:$0xff]
    %v210 = vld [vmem:[#allocation7 + $0x118] sm:$0xff]
    %v211 = vld [vmem:[#allocation7 + $0x120] sm:$0xff]
    %v212 = vld [vmem:[#allocation7 + $0x128] sm:$0xff]
    %v213 = vld [vmem:[#allocation7 + $0x130] sm:$0xff]
    %v214 = vld [vmem:[#allocation7 + $0x138] sm:$0xff]
    %v215 = vld [vmem:[#allocation7 + $0x140] sm:$0xff]
    %v216 = vld [vmem:[#allocation7 + $0x148] sm:$0xff]
    %v217 = vld [vmem:[#allocation7 + $0x150] sm:$0xff]
    %v218 = vld [vmem:[#allocation7 + $0x158] sm:$0xff]
    %v219 = vld [vmem:[#allocation7 + $0x160] sm:$0xff]
    %v220 = vld [vmem:[#allocation7 + $0x168] sm:$0xff]
    %v221 = vld [vmem:[#allocation7 + $0x170] sm:$0xff]
    %v222 = vld [vmem:[#allocation7 + $0x178] sm:$0xff]
    %v223 = vld [vmem:[#allocation7 + $0x180] sm:$0xff]
    %v224 = vld [vmem:[#allocation7 + $0x188] sm:$0xff]
    %v225 = vld [vmem:[#allocation7 + $0x190] sm:$0xff]
    %v226 = vld [vmem:[#allocation7 + $0x198] sm:$0xff]
    %v227 = vld [vmem:[#allocation7 + $0x1a0] sm:$0xff]
    %v228 = vld [vmem:[#allocation7 + $0x1a8] sm:$0xff]
    %v229 = vld [vmem:[#allocation7 + $0x1b0] sm:$0xff]
    %v230 = vld [vmem:[#allocation7 + $0x1b8] sm:$0xff]
    %v231 = vld [vmem:[#allocation7 + $0x1c0] sm:$0xff]
    %v232 = vld [vmem:[#allocation7 + $0x1c8] sm:$0xff]
    %v233 = vld [vmem:[#allocation7 + $0x1d0] sm:$0xff]
    %v234 = vld [vmem:[#allocation7 + $0x1d8] sm:$0xff]
    %v235 = vld [vmem:[#allocation7 + $0x1e0] sm:$0xff]
    %v236 = vld [vmem:[#allocation7 + $0x1e8] sm:$0xff]
    %v237 = vld [vmem:[#allocation7 + $0x1f0] sm:$0xff]
    %v238 = vld [vmem:[#allocation7 + $0x1f8] sm:$0xff]
    %v239 = vld [vmem:[%s4] sm:$0xf]
    %v241 = vlaneseq
    %v242 = vshrl.u32 %v241, 7
    %v243 = vsub.s32 0, %v242
    %v244 = vrot.slane %v239, %v243
    %v245 = vlaneseq
    %v246 = vshrl.u32 %v245, 7
    %v247 = vsub.s32 1, %v246
    %v248 = vrot.slane %v239, %v247
    %v249 = vlaneseq
    %v250 = vshrl.u32 %v249, 7
    %v251 = vsub.s32 2, %v250
    %v252 = vrot.slane %v239, %v251
    %v253 = vlaneseq
    %v254 = vshrl.u32 %v253, 7
    %v255 = vsub.s32 3, %v254
    %v256 = vrot.slane %v239, %v255
    %v325 = vunpack.c.l.b16 %v175
    %v326 = vunpack.c.h.b16 %v175
    %v327 = vunpack.c.l.b16 %v176
    %v328 = vunpack.c.h.b16 %v176
    %v329 = vunpack.c.l.b16 %v177
    %v330 = vunpack.c.h.b16 %v177
    %v331 = vunpack.c.l.b16 %v178
    %v332 = vunpack.c.h.b16 %v178
    %v333 = vunpack.c.l.b16 %v179
    %v334 = vunpack.c.h.b16 %v179
    %v335 = vunpack.c.l.b16 %v180
    %v336 = vunpack.c.h.b16 %v180
    %v337 = vunpack.c.l.b16 %v181
    %v338 = vunpack.c.h.b16 %v181
    %v339 = vunpack.c.l.b16 %v182
    %v340 = vunpack.c.h.b16 %v182
    %v341 = vunpack.c.l.b16 %v183
    %v342 = vunpack.c.h.b16 %v183
    %v343 = vunpack.c.l.b16 %v184
    %v344 = vunpack.c.h.b16 %v184
    %v345 = vunpack.c.l.b16 %v185
    %v346 = vunpack.c.h.b16 %v185
    %v347 = vunpack.c.l.b16 %v186
    %v348 = vunpack.c.h.b16 %v186
    %v349 = vunpack.c.l.b16 %v187
    %v350 = vunpack.c.h.b16 %v187
    %v351 = vunpack.c.l.b16 %v188
    %v352 = vunpack.c.h.b16 %v188
    %v353 = vunpack.c.l.b16 %v189
    %v354 = vunpack.c.h.b16 %v189
    %v355 = vunpack.c.l.b16 %v190
    %v356 = vunpack.c.h.b16 %v190
    %v357 = vunpack.c.l.b16 %v191
    %v358 = vunpack.c.h.b16 %v191
    %v359 = vunpack.c.l.b16 %v192
    %v360 = vunpack.c.h.b16 %v192
    %v361 = vunpack.c.l.b16 %v193
    %v362 = vunpack.c.h.b16 %v193
    %v363 = vunpack.c.l.b16 %v194
    %v364 = vunpack.c.h.b16 %v194
    %v365 = vunpack.c.l.b16 %v195
    %v366 = vunpack.c.h.b16 %v195
    %v367 = vunpack.c.l.b16 %v196
    %v368 = vunpack.c.h.b16 %v196
    %v369 = vunpack.c.l.b16 %v197
    %v370 = vunpack.c.h.b16 %v197
    %v371 = vunpack.c.l.b16 %v198
    %v372 = vunpack.c.h.b16 %v198
    %v373 = vunpack.c.l.b16 %v199
    %v374 = vunpack.c.h.b16 %v199
    %v375 = vunpack.c.l.b16 %v200
    %v376 = vunpack.c.h.b16 %v200
    %v377 = vunpack.c.l.b16 %v201
    %v378 = vunpack.c.h.b16 %v201
    %v379 = vunpack.c.l.b16 %v202
    %v380 = vunpack.c.h.b16 %v202
    %v381 = vunpack.c.l.b16 %v203
    %v382 = vunpack.c.h.b16 %v203
    %v383 = vunpack.c.l.b16 %v204
    %v384 = vunpack.c.h.b16 %v204
    %v385 = vunpack.c.l.b16 %v205
    %v386 = vunpack.c.h.b16 %v205
    %v387 = vunpack.c.l.b16 %v206
    %v388 = vunpack.c.h.b16 %v206
    %v389 = vunpack.c.l.b16 %v207
    %v390 = vunpack.c.h.b16 %v207
    %v391 = vunpack.c.l.b16 %v208
    %v392 = vunpack.c.h.b16 %v208
    %v393 = vunpack.c.l.b16 %v209
    %v394 = vunpack.c.h.b16 %v209
    %v395 = vunpack.c.l.b16 %v210
    %v396 = vunpack.c.h.b16 %v210
    %v397 = vunpack.c.l.b16 %v211
    %v398 = vunpack.c.h.b16 %v211
    %v399 = vunpack.c.l.b16 %v212
    %v400 = vunpack.c.h.b16 %v212
    %v401 = vunpack.c.l.b16 %v213
    %v402 = vunpack.c.h.b16 %v213
    %v403 = vunpack.c.l.b16 %v214
    %v404 = vunpack.c.h.b16 %v214
    %v405 = vunpack.c.l.b16 %v215
    %v406 = vunpack.c.h.b16 %v215
    %v407 = vunpack.c.l.b16 %v216
    %v408 = vunpack.c.h.b16 %v216
    %v409 = vunpack.c.l.b16 %v217
    %v410 = vunpack.c.h.b16 %v217
    %v411 = vunpack.c.l.b16 %v218
    %v412 = vunpack.c.h.b16 %v218
    %v413 = vunpack.c.l.b16 %v219
    %v414 = vunpack.c.h.b16 %v219
    %v415 = vunpack.c.l.b16 %v220
    %v416 = vunpack.c.h.b16 %v220
    %v417 = vunpack.c.l.b16 %v221
    %v418 = vunpack.c.h.b16 %v221
    %v419 = vunpack.c.l.b16 %v222
    %v420 = vunpack.c.h.b16 %v222
    %v421 = vunpack.c.l.b16 %v223
    %v422 = vunpack.c.h.b16 %v223
    %v423 = vunpack.c.l.b16 %v224
    %v424 = vunpack.c.h.b16 %v224
    %v425 = vunpack.c.l.b16 %v225
    %v426 = vunpack.c.h.b16 %v225
    %v427 = vunpack.c.l.b16 %v226
    %v428 = vunpack.c.h.b16 %v226
    %v429 = vunpack.c.l.b16 %v227
    %v430 = vunpack.c.h.b16 %v227
    %v431 = vunpack.c.l.b16 %v228
    %v432 = vunpack.c.h.b16 %v228
    %v433 = vunpack.c.l.b16 %v229
    %v434 = vunpack.c.h.b16 %v229
    %v435 = vunpack.c.l.b16 %v230
    %v436 = vunpack.c.h.b16 %v230
    %v437 = vunpack.c.l.b16 %v231
    %v438 = vunpack.c.h.b16 %v231
    %v439 = vunpack.c.l.b16 %v232
    %v440 = vunpack.c.h.b16 %v232
    %v441 = vunpack.c.l.b16 %v233
    %v442 = vunpack.c.h.b16 %v233
    %v443 = vunpack.c.l.b16 %v234
    %v444 = vunpack.c.h.b16 %v234
    %v445 = vunpack.c.l.b16 %v235
    %v446 = vunpack.c.h.b16 %v235
    %v447 = vunpack.c.l.b16 %v236
    %v448 = vunpack.c.h.b16 %v236
    %v449 = vunpack.c.l.b16 %v237
    %v450 = vunpack.c.h.b16 %v237
    %v451 = vunpack.c.l.b16 %v238
    %v452 = vunpack.c.h.b16 %v238
    %v453 = vpack.c.b16 %v329, %v325
    %v454 = vpack.c.b16 %v330, %v326
    %v455 = vpack.c.b16 %v331, %v327
    %v456 = vpack.c.b16 %v332, %v328
    %v457 = vpack.c.b16 %v337, %v333
    %v458 = vpack.c.b16 %v338, %v334
    %v459 = vpack.c.b16 %v339, %v335
    %v460 = vpack.c.b16 %v340, %v336
    %v461 = vpack.c.b16 %v345, %v341
    %v462 = vpack.c.b16 %v346, %v342
    %v463 = vpack.c.b16 %v347, %v343
    %v464 = vpack.c.b16 %v348, %v344
    %v465 = vpack.c.b16 %v353, %v349
    %v466 = vpack.c.b16 %v354, %v350
    %v467 = vpack.c.b16 %v355, %v351
    %v468 = vpack.c.b16 %v356, %v352
    %v469 = vpack.c.b16 %v361, %v357
    %v470 = vpack.c.b16 %v362, %v358
    %v471 = vpack.c.b16 %v363, %v359
    %v472 = vpack.c.b16 %v364, %v360
    %v473 = vpack.c.b16 %v369, %v365
    %v474 = vpack.c.b16 %v370, %v366
    %v475 = vpack.c.b16 %v371, %v367
    %v476 = vpack.c.b16 %v372, %v368
    %v477 = vpack.c.b16 %v377, %v373
    %v478 = vpack.c.b16 %v378, %v374
    %v479 = vpack.c.b16 %v379, %v375
    %v480 = vpack.c.b16 %v380, %v376
    %v481 = vpack.c.b16 %v385, %v381
    %v482 = vpack.c.b16 %v386, %v382
    %v483 = vpack.c.b16 %v387, %v383
    %v484 = vpack.c.b16 %v388, %v384
    %v485 = vpack.c.b16 %v393, %v389
    %v486 = vpack.c.b16 %v394, %v390
    %v487 = vpack.c.b16 %v395, %v391
    %v488 = vpack.c.b16 %v396, %v392
    %v489 = vpack.c.b16 %v401, %v397
    %v490 = vpack.c.b16 %v402, %v398
    %v491 = vpack.c.b16 %v403, %v399
    %v492 = vpack.c.b16 %v404, %v400
    %v493 = vpack.c.b16 %v409, %v405
    %v494 = vpack.c.b16 %v410, %v406
    %v495 = vpack.c.b16 %v411, %v407
    %v496 = vpack.c.b16 %v412, %v408
    %v497 = vpack.c.b16 %v417, %v413
    %v498 = vpack.c.b16 %v418, %v414
    %v499 = vpack.c.b16 %v419, %v415
    %v500 = vpack.c.b16 %v420, %v416
    %v501 = vpack.c.b16 %v425, %v421
    %v502 = vpack.c.b16 %v426, %v422
    %v503 = vpack.c.b16 %v427, %v423
    %v504 = vpack.c.b16 %v428, %v424
    %v505 = vpack.c.b16 %v433, %v429
    %v506 = vpack.c.b16 %v434, %v430
    %v507 = vpack.c.b16 %v435, %v431
    %v508 = vpack.c.b16 %v436, %v432
    %v509 = vpack.c.b16 %v441, %v437
    %v510 = vpack.c.b16 %v442, %v438
    %v511 = vpack.c.b16 %v443, %v439
    %v512 = vpack.c.b16 %v444, %v440
    %v513 = vpack.c.b16 %v449, %v445
    %v514 = vpack.c.b16 %v450, %v446
    %v515 = vpack.c.b16 %v451, %v447
    %v516 = vpack.c.b16 %v452, %v448
    %581 = vmatprep.subr.bf16.mxu0 %v454
    %582 = vmatpush1.bf16.msra.mxu0 %v453
    %583 = vmatprep.subr.bf16.mxu0 %v458
    %584 = vmatpush1.bf16.msra.mxu0 %v457
    %585 = vmatprep.subr.bf16.mxu0 %v462
    %586 = vmatpush1.bf16.msra.mxu0 %v461
    %587 = vmatprep.subr.bf16.mxu0 %v466
    %588 = vmatpush1.bf16.msra.mxu0 %v465
    %589 = vmatprep.subr.bf16.mxu0 %v470
    %590 = vmatpush1.bf16.msra.mxu0 %v469
    %591 = vmatprep.subr.bf16.mxu0 %v474
    %592 = vmatpush1.bf16.msra.mxu0 %v473
    %593 = vmatprep.subr.bf16.mxu0 %v478
    %594 = vmatpush1.bf16.msra.mxu0 %v477
    %595 = vmatprep.subr.bf16.mxu0 %v482
    %596 = vmatpush1.bf16.msra.mxu0 %v481
    %597 = vmatprep.subr.bf16.mxu0 %v486
    %598 = vmatpush1.bf16.msra.mxu0 %v485
    %599 = vmatprep.subr.bf16.mxu0 %v490
    %600 = vmatpush1.bf16.msra.mxu0 %v489
    %601 = vmatprep.subr.bf16.mxu0 %v494
    %602 = vmatpush1.bf16.msra.mxu0 %v493
    %603 = vmatprep.subr.bf16.mxu0 %v498
    %604 = vmatpush1.bf16.msra.mxu0 %v497
    %605 = vmatprep.subr.bf16.mxu0 %v502
    %606 = vmatpush1.bf16.msra.mxu0 %v501
    %607 = vmatprep.subr.bf16.mxu0 %v506
    %608 = vmatpush1.bf16.msra.mxu0 %v505
    %609 = vmatprep.subr.bf16.mxu0 %v510
    %610 = vmatpush1.bf16.msra.mxu0 %v509
    %611 = vmatprep.subr.bf16.mxu0 %v514
    %612 = vmatpush1.bf16.msra.mxu0 %v513
    %613 = vmatprep.mubr.bf16.mxu0 %v174
    %614 = vmatmul.mubr.bf16.gmra.mrb[0].mxu0 %v173
    %v615 = vpop.f32.mrb[0].mxu0
    %v616 = vadd.f32 %v244, %v615
    %v617 = vpop.f32.mrb[0].mxu0
    %v618 = vadd.f32 %v248, %v617
    %v619 = vpop.f32.mrb[0].mxu0
    %v620 = vadd.f32 %v244, %v619
    %v621 = vpop.f32.mrb[0].mxu0
    %v622 = vadd.f32 %v248, %v621
    %623 = vdwg.mxu0
    %624 = vmatprep.subr.bf16.mxu0 %v456
    %625 = vmatpush1.bf16.msra.mxu0 %v455
    %626 = vmatprep.subr.bf16.mxu0 %v460
    %627 = vmatpush1.bf16.msra.mxu0 %v459
    %628 = vmatprep.subr.bf16.mxu0 %v464
    %629 = vmatpush1.bf16.msra.mxu0 %v463
    %630 = vmatprep.subr.bf16.mxu0 %v468
    %631 = vmatpush1.bf16.msra.mxu0 %v467
    %632 = vmatprep.subr.bf16.mxu0 %v472
    %633 = vmatpush1.bf16.msra.mxu0 %v471
    %634 = vmatprep.subr.bf16.mxu0 %v476
    %635 = vmatpush1.bf16.msra.mxu0 %v475
    %636 = vmatprep.subr.bf16.mxu0 %v480
    %637 = vmatpush1.bf16.msra.mxu0 %v479
    %638 = vmatprep.subr.bf16.mxu0 %v484
    %639 = vmatpush1.bf16.msra.mxu0 %v483
    %640 = vmatprep.subr.bf16.mxu0 %v488
    %641 = vmatpush1.bf16.msra.mxu0 %v487
    %642 = vmatprep.subr.bf16.mxu0 %v492
    %643 = vmatpush1.bf16.msra.mxu0 %v491
    %644 = vmatprep.subr.bf16.mxu0 %v496
    %645 = vmatpush1.bf16.msra.mxu0 %v495
    %646 = vmatprep.subr.bf16.mxu0 %v500
    %647 = vmatpush1.bf16.msra.mxu0 %v499
    %648 = vmatprep.subr.bf16.mxu0 %v504
    %649 = vmatpush1.bf16.msra.mxu0 %v503
    %650 = vmatprep.subr.bf16.mxu0 %v508
    %651 = vmatpush1.bf16.msra.mxu0 %v507
    %652 = vmatprep.subr.bf16.mxu0 %v512
    %653 = vmatpush1.bf16.msra.mxu0 %v511
    %654 = vmatprep.subr.bf16.mxu0 %v516
    %655 = vmatpush1.bf16.msra.mxu0 %v515
    %656 = vmatprep.mubr.bf16.mxu0 %v174
    %657 = vmatmul.mubr.bf16.gmra.mrb[0].mxu0 %v173
    %v658 = vpop.f32.mrb[0].mxu0
    %v659 = vadd.f32 %v252, %v658
    %v660 = vpop.f32.mrb[0].mxu0
    %v661 = vadd.f32 %v256, %v660
    %v662 = vpop.f32.mrb[0].mxu0
    %v663 = vadd.f32 %v252, %v662
    %v664 = vpop.f32.mrb[0].mxu0
    %v665 = vadd.f32 %v256, %v664
    %666 = vdwg.mxu0
    %v667 = vmax.f32 %v616, 0.0
    %v668 = vmax.f32 %v618, 0.0
    %v669 = vmax.f32 %v659, 0.0
    %v670 = vmax.f32 %v661, 0.0
    %v671 = vmax.f32 %v620, 0.0
    %v672 = vmax.f32 %v622, 0.0
    %v673 = vmax.f32 %v663, 0.0
    %v674 = vmax.f32 %v665, 0.0
    %v675 = vpack.c.bf16 %v671, %v667
    %v676 = vpack.c.bf16 %v672, %v668
    %v677 = vpack.c.bf16 %v673, %v669
    %v678 = vpack.c.bf16 %v674, %v670
    %v679 = vld [vmem:[#allocation8] sm:$0xff]
    %v680 = vld [vmem:[#allocation8 + $0x8] sm:$0xff]
    %v681 = vld [vmem:[#allocation8 + $0x10] sm:$0xff]
    %v682 = vld [vmem:[#allocation8 + $0x18] sm:$0xf]
    %v683 = vld [vmem:[#allocation8 + $0x1c] sm:$0xff]
    %v684 = vld [vmem:[#allocation8 + $0x24] sm:$0xff]
    %v685 = vld [vmem:[#allocation8 + $0x2c] sm:$0xff]
    %v686 = vld [vmem:[#allocation8 + $0x34] sm:$0xf]
    %v687 = vld [vmem:[#allocation8 + $0x38] sm:$0xff]
    %v688 = vld [vmem:[#allocation8 + $0x40] sm:$0xff]
    %v689 = vld [vmem:[#allocation8 + $0x48] sm:$0xff]
    %v690 = vld [vmem:[#allocation8 + $0x50] sm:$0xf]
    %v691 = vld [vmem:[#allocation8 + $0x54] sm:$0xff]
    %v692 = vld [vmem:[#allocation8 + $0x5c] sm:$0xff]
    %v693 = vld [vmem:[#allocation8 + $0x64] sm:$0xff]
    %v694 = vld [vmem:[#allocation8 + $0x6c] sm:$0xf]
    %v695 = vld [vmem:[#allocation8 + $0x70] sm:$0xff]
    %v696 = vld [vmem:[#allocation8 + $0x78] sm:$0xff]
    %v697 = vld [vmem:[#allocation8 + $0x80] sm:$0xff]
    %v698 = vld [vmem:[#allocation8 + $0x88] sm:$0xf]
    %v699 = vld [vmem:[#allocation8 + $0x8c] sm:$0xff]
    %v700 = vld [vmem:[#allocation8 + $0x94] sm:$0xff]
    %v701 = vld [vmem:[#allocation8 + $0x9c] sm:$0xff]
    %v702 = vld [vmem:[#allocation8 + $0xa4] sm:$0xf]
    %v703 = vld [vmem:[#allocation8 + $0xa8] sm:$0xff]
    %v704 = vld [vmem:[#allocation8 + $0xb0] sm:$0xff]
    %v705 = vld [vmem:[#allocation8 + $0xb8] sm:$0xff]
    %v706 = vld [vmem:[#allocation8 + $0xc0] sm:$0xf]
    %v707 = vld [vmem:[#allocation8 + $0xc4] sm:$0xff]
    %v708 = vld [vmem:[#allocation8 + $0xcc] sm:$0xff]
    %v709 = vld [vmem:[#allocation8 + $0xd4] sm:$0xff]
    %v710 = vld [vmem:[#allocation8 + $0xdc] sm:$0xf]
    %v711 = vld [vmem:[#allocation8 + $0xe0] sm:$0xff]
    %v712 = vld [vmem:[#allocation8 + $0xe8] sm:$0xff]
    %v713 = vld [vmem:[#allocation8 + $0xf0] sm:$0xff]
    %v714 = vld [vmem:[#allocation8 + $0xf8] sm:$0xf]
    %v715 = vld [vmem:[#allocation8 + $0xfc] sm:$0xff]
    %v716 = vld [vmem:[#allocation8 + $0x104] sm:$0xff]
    %v717 = vld [vmem:[#allocation8 + $0x10c] sm:$0xff]
    %v718 = vld [vmem:[#allocation8 + $0x114] sm:$0xf]
    %v719 = vld [vmem:[#allocation8 + $0x118] sm:$0xff]
    %v720 = vld [vmem:[#allocation8 + $0x120] sm:$0xff]
    %v721 = vld [vmem:[#allocation8 + $0x128] sm:$0xff]
    %v722 = vld [vmem:[#allocation8 + $0x130] sm:$0xf]
    %v723 = vld [vmem:[#allocation8 + $0x134] sm:$0xff]
    %v724 = vld [vmem:[#allocation8 + $0x13c] sm:$0xff]
    %v725 = vld [vmem:[#allocation8 + $0x144] sm:$0xff]
    %v726 = vld [vmem:[#allocation8 + $0x14c] sm:$0xf]
    %v727 = vld [vmem:[#allocation8 + $0x150] sm:$0xff]
    %v728 = vld [vmem:[#allocation8 + $0x158] sm:$0xff]
    %v729 = vld [vmem:[#allocation8 + $0x160] sm:$0xff]
    %v730 = vld [vmem:[#allocation8 + $0x168] sm:$0xf]
    %v731 = vld [vmem:[#allocation8 + $0x16c] sm:$0xff]
    %v732 = vld [vmem:[#allocation8 + $0x174] sm:$0xff]
    %v733 = vld [vmem:[#allocation8 + $0x17c] sm:$0xff]
    %v734 = vld [vmem:[#allocation8 + $0x184] sm:$0xf]
    %v735 = vld [vmem:[#allocation8 + $0x188] sm:$0xff]
    %v736 = vld [vmem:[#allocation8 + $0x190] sm:$0xff]
    %v737 = vld [vmem:[#allocation8 + $0x198] sm:$0xff]
    %v738 = vld [vmem:[#allocation8 + $0x1a0] sm:$0xf]
    %v739 = vld [vmem:[#allocation8 + $0x1a4] sm:$0xff]
    %v740 = vld [vmem:[#allocation8 + $0x1ac] sm:$0xff]
    %v741 = vld [vmem:[#allocation8 + $0x1b4] sm:$0xff]
    %v742 = vld [vmem:[#allocation8 + $0x1bc] sm:$0xf]
    %v743 = vld [vmem:[#allocation8 + $0x1c0] sm:$0xff]
    %v744 = vld [vmem:[#allocation8 + $0x1c8] sm:$0xff]
    %v745 = vld [vmem:[#allocation8 + $0x1d0] sm:$0xff]
    %v746 = vld [vmem:[#allocation8 + $0x1d8] sm:$0xf]
    %v747 = vld [vmem:[#allocation8 + $0x1dc] sm:$0xff]
    %v748 = vld [vmem:[#allocation8 + $0x1e4] sm:$0xff]
    %v749 = vld [vmem:[#allocation8 + $0x1ec] sm:$0xff]
    %v750 = vld [vmem:[#allocation8 + $0x1f4] sm:$0xf]
    %v751 = vld [vmem:[#allocation8 + $0x1f8] sm:$0xff]
    %v752 = vld [vmem:[#allocation8 + $0x200] sm:$0xff]
    %v753 = vld [vmem:[#allocation8 + $0x208] sm:$0xff]
    %v754 = vld [vmem:[#allocation8 + $0x210] sm:$0xf]
    %v755 = vld [vmem:[#allocation8 + $0x214] sm:$0xff]
    %v756 = vld [vmem:[#allocation8 + $0x21c] sm:$0xff]
    %v757 = vld [vmem:[#allocation8 + $0x224] sm:$0xff]
    %v758 = vld [vmem:[#allocation8 + $0x22c] sm:$0xf]
    %v759 = vld [vmem:[#allocation8 + $0x230] sm:$0xff]
    %v760 = vld [vmem:[#allocation8 + $0x238] sm:$0xff]
    %v761 = vld [vmem:[#allocation8 + $0x240] sm:$0xff]
    %v762 = vld [vmem:[#allocation8 + $0x248] sm:$0xf]
    %v763 = vld [vmem:[#allocation8 + $0x24c] sm:$0xff]
    %v764 = vld [vmem:[#allocation8 + $0x254] sm:$0xff]
    %v765 = vld [vmem:[#allocation8 + $0x25c] sm:$0xff]
    %v766 = vld [vmem:[#allocation8 + $0x264] sm:$0xf]
    %v767 = vld [vmem:[#allocation8 + $0x268] sm:$0xff]
    %v768 = vld [vmem:[#allocation8 + $0x270] sm:$0xff]
    %v769 = vld [vmem:[#allocation8 + $0x278] sm:$0xff]
    %v770 = vld [vmem:[#allocation8 + $0x280] sm:$0xf]
    %v771 = vld [vmem:[#allocation8 + $0x284] sm:$0xff]
    %v772 = vld [vmem:[#allocation8 + $0x28c] sm:$0xff]
    %v773 = vld [vmem:[#allocation8 + $0x294] sm:$0xff]
    %v774 = vld [vmem:[#allocation8 + $0x29c] sm:$0xf]
    %v775 = vld [vmem:[#allocation8 + $0x2a0] sm:$0xff]
    %v776 = vld [vmem:[#allocation8 + $0x2a8] sm:$0xff]
    %v777 = vld [vmem:[#allocation8 + $0x2b0] sm:$0xff]
    %v778 = vld [vmem:[#allocation8 + $0x2b8] sm:$0xf]
    %v779 = vld [vmem:[#allocation8 + $0x2bc] sm:$0xff]
    %v780 = vld [vmem:[#allocation8 + $0x2c4] sm:$0xff]
    %v781 = vld [vmem:[#allocation8 + $0x2cc] sm:$0xff]
    %v782 = vld [vmem:[#allocation8 + $0x2d4] sm:$0xf]
    %v783 = vld [vmem:[#allocation8 + $0x2d8] sm:$0xff]
    %v784 = vld [vmem:[#allocation8 + $0x2e0] sm:$0xff]
    %v785 = vld [vmem:[#allocation8 + $0x2e8] sm:$0xff]
    %v786 = vld [vmem:[#allocation8 + $0x2f0] sm:$0xf]
    %v787 = vld [vmem:[#allocation8 + $0x2f4] sm:$0xff]
    %v788 = vld [vmem:[#allocation8 + $0x2fc] sm:$0xff]
    %v789 = vld [vmem:[#allocation8 + $0x304] sm:$0xff]
    %v790 = vld [vmem:[#allocation8 + $0x30c] sm:$0xf]
    %v791 = vld [vmem:[#allocation8 + $0x310] sm:$0xff]
    %v792 = vld [vmem:[#allocation8 + $0x318] sm:$0xff]
    %v793 = vld [vmem:[#allocation8 + $0x320] sm:$0xff]
    %v794 = vld [vmem:[#allocation8 + $0x328] sm:$0xf]
    %v795 = vld [vmem:[#allocation8 + $0x32c] sm:$0xff]
    %v796 = vld [vmem:[#allocation8 + $0x334] sm:$0xff]
    %v797 = vld [vmem:[#allocation8 + $0x33c] sm:$0xff]
    %v798 = vld [vmem:[#allocation8 + $0x344] sm:$0xf]
    %v799 = vld [vmem:[#allocation8 + $0x348] sm:$0xff]
    %v800 = vld [vmem:[#allocation8 + $0x350] sm:$0xff]
    %v801 = vld [vmem:[#allocation8 + $0x358] sm:$0xff]
    %v802 = vld [vmem:[#allocation8 + $0x360] sm:$0xf]
    %v803 = vld [vmem:[#allocation8 + $0x364] sm:$0xff]
    %v804 = vld [vmem:[#allocation8 + $0x36c] sm:$0xff]
    %v805 = vld [vmem:[#allocation8 + $0x374] sm:$0xff]
    %v806 = vld [vmem:[#allocation8 + $0x37c] sm:$0xf]
    %v807 = vld [vmem:[#allocation8 + $0x380] sm:$0xff]
    %v808 = vld [vmem:[#allocation8 + $0x388] sm:$0xff]
    %v809 = vld [vmem:[#allocation8 + $0x390] sm:$0xff]
    %v810 = vld [vmem:[#allocation8 + $0x398] sm:$0xf]
    %v811 = vld [vmem:[#allocation8 + $0x39c] sm:$0xff]
    %v812 = vld [vmem:[#allocation8 + $0x3a4] sm:$0xff]
    %v813 = vld [vmem:[#allocation8 + $0x3ac] sm:$0xff]
    %v814 = vld [vmem:[#allocation8 + $0x3b4] sm:$0xf]
    %v815 = vld [vmem:[#allocation8 + $0x3b8] sm:$0xff]
    %v816 = vld [vmem:[#allocation8 + $0x3c0] sm:$0xff]
    %v817 = vld [vmem:[#allocation8 + $0x3c8] sm:$0xff]
    %v818 = vld [vmem:[#allocation8 + $0x3d0] sm:$0xf]
    %v819 = vld [vmem:[#allocation8 + $0x3d4] sm:$0xff]
    %v820 = vld [vmem:[#allocation8 + $0x3dc] sm:$0xff]
    %v821 = vld [vmem:[#allocation8 + $0x3e4] sm:$0xff]
    %v822 = vld [vmem:[#allocation8 + $0x3ec] sm:$0xf]
    %v823 = vld [vmem:[#allocation8 + $0x3f0] sm:$0xff]
    %v824 = vld [vmem:[#allocation8 + $0x3f8] sm:$0xff]
    %v825 = vld [vmem:[#allocation8 + $0x400] sm:$0xff]
    %v826 = vld [vmem:[#allocation8 + $0x408] sm:$0xf]
    %v827 = vld [vmem:[#allocation8 + $0x40c] sm:$0xff]
    %v828 = vld [vmem:[#allocation8 + $0x414] sm:$0xff]
    %v829 = vld [vmem:[#allocation8 + $0x41c] sm:$0xff]
    %v830 = vld [vmem:[#allocation8 + $0x424] sm:$0xf]
    %v831 = vld [vmem:[#allocation8 + $0x428] sm:$0xff]
    %v832 = vld [vmem:[#allocation8 + $0x430] sm:$0xff]
    %v833 = vld [vmem:[#allocation8 + $0x438] sm:$0xff]
    %v834 = vld [vmem:[#allocation8 + $0x440] sm:$0xf]
    %v835 = vld [vmem:[#allocation8 + $0x444] sm:$0xff]
    %v836 = vld [vmem:[#allocation8 + $0x44c] sm:$0xff]
    %v837 = vld [vmem:[#allocation8 + $0x454] sm:$0xff]
    %v838 = vld [vmem:[#allocation8 + $0x45c] sm:$0xf]
    %v839 = vld [vmem:[#allocation8 + $0x460] sm:$0xff]
    %v840 = vld [vmem:[#allocation8 + $0x468] sm:$0xff]
    %v841 = vld [vmem:[#allocation8 + $0x470] sm:$0xff]
    %v842 = vld [vmem:[#allocation8 + $0x478] sm:$0xf]
    %v843 = vld [vmem:[#allocation8 + $0x47c] sm:$0xff]
    %v844 = vld [vmem:[#allocation8 + $0x484] sm:$0xff]
    %v845 = vld [vmem:[#allocation8 + $0x48c] sm:$0xff]
    %v846 = vld [vmem:[#allocation8 + $0x494] sm:$0xf]
    %v847 = vld [vmem:[#allocation8 + $0x498] sm:$0xff]
    %v848 = vld [vmem:[#allocation8 + $0x4a0] sm:$0xff]
    %v849 = vld [vmem:[#allocation8 + $0x4a8] sm:$0xff]
    %v850 = vld [vmem:[#allocation8 + $0x4b0] sm:$0xf]
    %v851 = vld [vmem:[#allocation8 + $0x4b4] sm:$0xff]
    %v852 = vld [vmem:[#allocation8 + $0x4bc] sm:$0xff]
    %v853 = vld [vmem:[#allocation8 + $0x4c4] sm:$0xff]
    %v854 = vld [vmem:[#allocation8 + $0x4cc] sm:$0xf]
    %v855 = vld [vmem:[#allocation8 + $0x4d0] sm:$0xff]
    %v856 = vld [vmem:[#allocation8 + $0x4d8] sm:$0xff]
    %v857 = vld [vmem:[#allocation8 + $0x4e0] sm:$0xff]
    %v858 = vld [vmem:[#allocation8 + $0x4e8] sm:$0xf]
    %v859 = vld [vmem:[#allocation8 + $0x4ec] sm:$0xff]
    %v860 = vld [vmem:[#allocation8 + $0x4f4] sm:$0xff]
    %v861 = vld [vmem:[#allocation8 + $0x4fc] sm:$0xff]
    %v862 = vld [vmem:[#allocation8 + $0x504] sm:$0xf]
    %v863 = vld [vmem:[#allocation8 + $0x508] sm:$0xff]
    %v864 = vld [vmem:[#allocation8 + $0x510] sm:$0xff]
    %v865 = vld [vmem:[#allocation8 + $0x518] sm:$0xff]
    %v866 = vld [vmem:[#allocation8 + $0x520] sm:$0xf]
    %v867 = vld [vmem:[#allocation8 + $0x524] sm:$0xff]
    %v868 = vld [vmem:[#allocation8 + $0x52c] sm:$0xff]
    %v869 = vld [vmem:[#allocation8 + $0x534] sm:$0xff]
    %v870 = vld [vmem:[#allocation8 + $0x53c] sm:$0xf]
    %v871 = vld [vmem:[#allocation8 + $0x540] sm:$0xff]
    %v872 = vld [vmem:[#allocation8 + $0x548] sm:$0xff]
    %v873 = vld [vmem:[#allocation8 + $0x550] sm:$0xff]
    %v874 = vld [vmem:[#allocation8 + $0x558] sm:$0xf]
    %v875 = vld [vmem:[#allocation8 + $0x55c] sm:$0xff]
    %v876 = vld [vmem:[#allocation8 + $0x564] sm:$0xff]
    %v877 = vld [vmem:[#allocation8 + $0x56c] sm:$0xff]
    %v878 = vld [vmem:[#allocation8 + $0x574] sm:$0xf]
    %v879 = vld [vmem:[#allocation8 + $0x578] sm:$0xff]
    %v880 = vld [vmem:[#allocation8 + $0x580] sm:$0xff]
    %v881 = vld [vmem:[#allocation8 + $0x588] sm:$0xff]
    %v882 = vld [vmem:[#allocation8 + $0x590] sm:$0xf]
    %v883 = vld [vmem:[#allocation8 + $0x594] sm:$0xff]
    %v884 = vld [vmem:[#allocation8 + $0x59c] sm:$0xff]
    %v885 = vld [vmem:[#allocation8 + $0x5a4] sm:$0xff]
    %v886 = vld [vmem:[#allocation8 + $0x5ac] sm:$0xf]
    %v887 = vld [vmem:[#allocation8 + $0x5b0] sm:$0xff]
    %v888 = vld [vmem:[#allocation8 + $0x5b8] sm:$0xff]
    %v889 = vld [vmem:[#allocation8 + $0x5c0] sm:$0xff]
    %v890 = vld [vmem:[#allocation8 + $0x5c8] sm:$0xf]
    %v891 = vld [vmem:[#allocation8 + $0x5cc] sm:$0xff]
    %v892 = vld [vmem:[#allocation8 + $0x5d4] sm:$0xff]
    %v893 = vld [vmem:[#allocation8 + $0x5dc] sm:$0xff]
    %v894 = vld [vmem:[#allocation8 + $0x5e4] sm:$0xf]
    %v895 = vld [vmem:[#allocation8 + $0x5e8] sm:$0xff]
    %v896 = vld [vmem:[#allocation8 + $0x5f0] sm:$0xff]
    %v897 = vld [vmem:[#allocation8 + $0x5f8] sm:$0xff]
    %v898 = vld [vmem:[#allocation8 + $0x600] sm:$0xf]
    %v899 = vld [vmem:[#allocation8 + $0x604] sm:$0xff]
    %v900 = vld [vmem:[#allocation8 + $0x60c] sm:$0xff]
    %v901 = vld [vmem:[#allocation8 + $0x614] sm:$0xff]
    %v902 = vld [vmem:[#allocation8 + $0x61c] sm:$0xf]
    %v903 = vld [vmem:[#allocation8 + $0x620] sm:$0xff]
    %v904 = vld [vmem:[#allocation8 + $0x628] sm:$0xff]
    %v905 = vld [vmem:[#allocation8 + $0x630] sm:$0xff]
    %v906 = vld [vmem:[#allocation8 + $0x638] sm:$0xf]
    %v907 = vld [vmem:[#allocation8 + $0x63c] sm:$0xff]
    %v908 = vld [vmem:[#allocation8 + $0x644] sm:$0xff]
    %v909 = vld [vmem:[#allocation8 + $0x64c] sm:$0xff]
    %v910 = vld [vmem:[#allocation8 + $0x654] sm:$0xf]
    %v911 = vld [vmem:[#allocation8 + $0x658] sm:$0xff]
    %v912 = vld [vmem:[#allocation8 + $0x660] sm:$0xff]
    %v913 = vld [vmem:[#allocation8 + $0x668] sm:$0xff]
    %v914 = vld [vmem:[#allocation8 + $0x670] sm:$0xf]
    %v915 = vld [vmem:[#allocation8 + $0x674] sm:$0xff]
    %v916 = vld [vmem:[#allocation8 + $0x67c] sm:$0xff]
    %v917 = vld [vmem:[#allocation8 + $0x684] sm:$0xff]
    %v918 = vld [vmem:[#allocation8 + $0x68c] sm:$0xf]
    %v919 = vld [vmem:[#allocation8 + $0x690] sm:$0xff]
    %v920 = vld [vmem:[#allocation8 + $0x698] sm:$0xff]
    %v921 = vld [vmem:[#allocation8 + $0x6a0] sm:$0xff]
    %v922 = vld [vmem:[#allocation8 + $0x6a8] sm:$0xf]
    %v923 = vld [vmem:[#allocation8 + $0x6ac] sm:$0xff]
    %v924 = vld [vmem:[#allocation8 + $0x6b4] sm:$0xff]
    %v925 = vld [vmem:[#allocation8 + $0x6bc] sm:$0xff]
    %v926 = vld [vmem:[#allocation8 + $0x6c4] sm:$0xf]
    %v927 = vld [vmem:[#allocation8 + $0x6c8] sm:$0xff]
    %v928 = vld [vmem:[#allocation8 + $0x6d0] sm:$0xff]
    %v929 = vld [vmem:[#allocation8 + $0x6d8] sm:$0xff]
    %v930 = vld [vmem:[#allocation8 + $0x6e0] sm:$0xf]
    %v931 = vld [vmem:[#allocation8 + $0x6e4] sm:$0xff]
    %v932 = vld [vmem:[#allocation8 + $0x6ec] sm:$0xff]
    %v933 = vld [vmem:[#allocation8 + $0x6f4] sm:$0xff]
    %v934 = vld [vmem:[#allocation8 + $0x6fc] sm:$0xf]
    %v935 = vld [vmem:[%s6] sm:$0xff]
    %v937 = vlaneseq
    %v938 = vshrl.u32 %v937, 7
    %v939 = vsub.s32 0, %v938
    %v940 = vrot.slane %v935, %v939
    %v941 = vlaneseq
    %v942 = vshrl.u32 %v941, 7
    %v943 = vsub.s32 1, %v942
    %v944 = vrot.slane %v935, %v943
    %v945 = vlaneseq
    %v946 = vshrl.u32 %v945, 7
    %v947 = vsub.s32 2, %v946
    %v948 = vrot.slane %v935, %v947
    %v949 = vlaneseq
    %v950 = vshrl.u32 %v949, 7
    %v951 = vsub.s32 3, %v950
    %v952 = vrot.slane %v935, %v951
    %v953 = vlaneseq
    %v954 = vshrl.u32 %v953, 7
    %v955 = vsub.s32 4, %v954
    %v956 = vrot.slane %v935, %v955
    %v957 = vlaneseq
    %v958 = vshrl.u32 %v957, 7
    %v959 = vsub.s32 5, %v958
    %v960 = vrot.slane %v935, %v959
    %v961 = vlaneseq
    %v962 = vshrl.u32 %v961, 7
    %v963 = vsub.s32 6, %v962
    %v964 = vrot.slane %v935, %v963
    %v1228 = vunpack.c.l.b16 %v679
    %v1229 = vunpack.c.h.b16 %v679
    %v1230 = vunpack.c.l.b16 %v680
    %v1231 = vunpack.c.h.b16 %v680
    %v1232 = vunpack.c.l.b16 %v681
    %v1233 = vunpack.c.h.b16 %v681
    %v1234 = vunpack.c.l.b16 %v682
    %v1235 = vunpack.c.l.b16 %v683
    %v1236 = vunpack.c.h.b16 %v683
    %v1237 = vunpack.c.l.b16 %v684
    %v1238 = vunpack.c.h.b16 %v684
    %v1239 = vunpack.c.l.b16 %v685
    %v1240 = vunpack.c.h.b16 %v685
    %v1241 = vunpack.c.l.b16 %v686
    %v1242 = vunpack.c.l.b16 %v687
    %v1243 = vunpack.c.h.b16 %v687
    %v1244 = vunpack.c.l.b16 %v688
    %v1245 = vunpack.c.h.b16 %v688
    %v1246 = vunpack.c.l.b16 %v689
    %v1247 = vunpack.c.h.b16 %v689
    %v1248 = vunpack.c.l.b16 %v690
    %v1249 = vunpack.c.l.b16 %v691
    %v1250 = vunpack.c.h.b16 %v691
    %v1251 = vunpack.c.l.b16 %v692
    %v1252 = vunpack.c.h.b16 %v692
    %v1253 = vunpack.c.l.b16 %v693
    %v1254 = vunpack.c.h.b16 %v693
    %v1255 = vunpack.c.l.b16 %v694
    %v1256 = vunpack.c.l.b16 %v695
    %v1257 = vunpack.c.h.b16 %v695
    %v1258 = vunpack.c.l.b16 %v696
    %v1259 = vunpack.c.h.b16 %v696
    %v1260 = vunpack.c.l.b16 %v697
    %v1261 = vunpack.c.h.b16 %v697
    %v1262 = vunpack.c.l.b16 %v698
    %v1263 = vunpack.c.l.b16 %v699
    %v1264 = vunpack.c.h.b16 %v699
    %v1265 = vunpack.c.l.b16 %v700
    %v1266 = vunpack.c.h.b16 %v700
    %v1267 = vunpack.c.l.b16 %v701
    %v1268 = vunpack.c.h.b16 %v701
    %v1269 = vunpack.c.l.b16 %v702
    %v1270 = vunpack.c.l.b16 %v703
    %v1271 = vunpack.c.h.b16 %v703
    %v1272 = vunpack.c.l.b16 %v704
    %v1273 = vunpack.c.h.b16 %v704
    %v1274 = vunpack.c.l.b16 %v705
    %v1275 = vunpack.c.h.b16 %v705
    %v1276 = vunpack.c.l.b16 %v706
    %v1277 = vunpack.c.l.b16 %v707
    %v1278 = vunpack.c.h.b16 %v707
    %v1279 = vunpack.c.l.b16 %v708
    %v1280 = vunpack.c.h.b16 %v708
    %v1281 = vunpack.c.l.b16 %v709
    %v1282 = vunpack.c.h.b16 %v709
    %v1283 = vunpack.c.l.b16 %v710
    %v1284 = vunpack.c.l.b16 %v711
    %v1285 = vunpack.c.h.b16 %v711
    %v1286 = vunpack.c.l.b16 %v712
    %v1287 = vunpack.c.h.b16 %v712
    %v1288 = vunpack.c.l.b16 %v713
    %v1289 = vunpack.c.h.b16 %v713
    %v1290 = vunpack.c.l.b16 %v714
    %v1291 = vunpack.c.l.b16 %v715
    %v1292 = vunpack.c.h.b16 %v715
    %v1293 = vunpack.c.l.b16 %v716
    %v1294 = vunpack.c.h.b16 %v716
    %v1295 = vunpack.c.l.b16 %v717
    %v1296 = vunpack.c.h.b16 %v717
    %v1297 = vunpack.c.l.b16 %v718
    %v1298 = vunpack.c.l.b16 %v719
    %v1299 = vunpack.c.h.b16 %v719
    %v1300 = vunpack.c.l.b16 %v720
    %v1301 = vunpack.c.h.b16 %v720
    %v1302 = vunpack.c.l.b16 %v721
    %v1303 = vunpack.c.h.b16 %v721
    %v1304 = vunpack.c.l.b16 %v722
    %v1305 = vunpack.c.l.b16 %v723
    %v1306 = vunpack.c.h.b16 %v723
    %v1307 = vunpack.c.l.b16 %v724
    %v1308 = vunpack.c.h.b16 %v724
    %v1309 = vunpack.c.l.b16 %v725
    %v1310 = vunpack.c.h.b16 %v725
    %v1311 = vunpack.c.l.b16 %v726
    %v1312 = vunpack.c.l.b16 %v727
    %v1313 = vunpack.c.h.b16 %v727
    %v1314 = vunpack.c.l.b16 %v728
    %v1315 = vunpack.c.h.b16 %v728
    %v1316 = vunpack.c.l.b16 %v729
    %v1317 = vunpack.c.h.b16 %v729
    %v1318 = vunpack.c.l.b16 %v730
    %v1319 = vunpack.c.l.b16 %v731
    %v1320 = vunpack.c.h.b16 %v731
    %v1321 = vunpack.c.l.b16 %v732
    %v1322 = vunpack.c.h.b16 %v732
    %v1323 = vunpack.c.l.b16 %v733
    %v1324 = vunpack.c.h.b16 %v733
    %v1325 = vunpack.c.l.b16 %v734
    %v1326 = vunpack.c.l.b16 %v735
    %v1327 = vunpack.c.h.b16 %v735
    %v1328 = vunpack.c.l.b16 %v736
    %v1329 = vunpack.c.h.b16 %v736
    %v1330 = vunpack.c.l.b16 %v737
    %v1331 = vunpack.c.h.b16 %v737
    %v1332 = vunpack.c.l.b16 %v738
    %v1333 = vunpack.c.l.b16 %v739
    %v1334 = vunpack.c.h.b16 %v739
    %v1335 = vunpack.c.l.b16 %v740
    %v1336 = vunpack.c.h.b16 %v740
    %v1337 = vunpack.c.l.b16 %v741
    %v1338 = vunpack.c.h.b16 %v741
    %v1339 = vunpack.c.l.b16 %v742
    %v1340 = vunpack.c.l.b16 %v743
    %v1341 = vunpack.c.h.b16 %v743
    %v1342 = vunpack.c.l.b16 %v744
    %v1343 = vunpack.c.h.b16 %v744
    %v1344 = vunpack.c.l.b16 %v745
    %v1345 = vunpack.c.h.b16 %v745
    %v1346 = vunpack.c.l.b16 %v746
    %v1347 = vunpack.c.l.b16 %v747
    %v1348 = vunpack.c.h.b16 %v747
    %v1349 = vunpack.c.l.b16 %v748
    %v1350 = vunpack.c.h.b16 %v748
    %v1351 = vunpack.c.l.b16 %v749
    %v1352 = vunpack.c.h.b16 %v749
    %v1353 = vunpack.c.l.b16 %v750
    %v1354 = vunpack.c.l.b16 %v751
    %v1355 = vunpack.c.h.b16 %v751
    %v1356 = vunpack.c.l.b16 %v752
    %v1357 = vunpack.c.h.b16 %v752
    %v1358 = vunpack.c.l.b16 %v753
    %v1359 = vunpack.c.h.b16 %v753
    %v1360 = vunpack.c.l.b16 %v754
    %v1361 = vunpack.c.l.b16 %v755
    %v1362 = vunpack.c.h.b16 %v755
    %v1363 = vunpack.c.l.b16 %v756
    %v1364 = vunpack.c.h.b16 %v756
    %v1365 = vunpack.c.l.b16 %v757
    %v1366 = vunpack.c.h.b16 %v757
    %v1367 = vunpack.c.l.b16 %v758
    %v1368 = vunpack.c.l.b16 %v759
    %v1369 = vunpack.c.h.b16 %v759
    %v1370 = vunpack.c.l.b16 %v760
    %v1371 = vunpack.c.h.b16 %v760
    %v1372 = vunpack.c.l.b16 %v761
    %v1373 = vunpack.c.h.b16 %v761
    %v1374 = vunpack.c.l.b16 %v762
    %v1375 = vunpack.c.l.b16 %v763
    %v1376 = vunpack.c.h.b16 %v763
    %v1377 = vunpack.c.l.b16 %v764
    %v1378 = vunpack.c.h.b16 %v764
    %v1379 = vunpack.c.l.b16 %v765
    %v1380 = vunpack.c.h.b16 %v765
    %v1381 = vunpack.c.l.b16 %v766
    %v1382 = vunpack.c.l.b16 %v767
    %v1383 = vunpack.c.h.b16 %v767
    %v1384 = vunpack.c.l.b16 %v768
    %v1385 = vunpack.c.h.b16 %v768
    %v1386 = vunpack.c.l.b16 %v769
    %v1387 = vunpack.c.h.b16 %v769
    %v1388 = vunpack.c.l.b16 %v770
    %v1389 = vunpack.c.l.b16 %v771
    %v1390 = vunpack.c.h.b16 %v771
    %v1391 = vunpack.c.l.b16 %v772
    %v1392 = vunpack.c.h.b16 %v772
    %v1393 = vunpack.c.l.b16 %v773
    %v1394 = vunpack.c.h.b16 %v773
    %v1395 = vunpack.c.l.b16 %v774
    %v1396 = vunpack.c.l.b16 %v775
    %v1397 = vunpack.c.h.b16 %v775
    %v1398 = vunpack.c.l.b16 %v776
    %v1399 = vunpack.c.h.b16 %v776
    %v1400 = vunpack.c.l.b16 %v777
    %v1401 = vunpack.c.h.b16 %v777
    %v1402 = vunpack.c.l.b16 %v778
    %v1403 = vunpack.c.l.b16 %v779
    %v1404 = vunpack.c.h.b16 %v779
    %v1405 = vunpack.c.l.b16 %v780
    %v1406 = vunpack.c.h.b16 %v780
    %v1407 = vunpack.c.l.b16 %v781
    %v1408 = vunpack.c.h.b16 %v781
    %v1409 = vunpack.c.l.b16 %v782
    %v1410 = vunpack.c.l.b16 %v783
    %v1411 = vunpack.c.h.b16 %v783
    %v1412 = vunpack.c.l.b16 %v784
    %v1413 = vunpack.c.h.b16 %v784
    %v1414 = vunpack.c.l.b16 %v785
    %v1415 = vunpack.c.h.b16 %v785
    %v1416 = vunpack.c.l.b16 %v786
    %v1417 = vunpack.c.l.b16 %v787
    %v1418 = vunpack.c.h.b16 %v787
    %v1419 = vunpack.c.l.b16 %v788
    %v1420 = vunpack.c.h.b16 %v788
    %v1421 = vunpack.c.l.b16 %v789
    %v1422 = vunpack.c.h.b16 %v789
    %v1423 = vunpack.c.l.b16 %v790
    %v1424 = vunpack.c.l.b16 %v791
    %v1425 = vunpack.c.h.b16 %v791
    %v1426 = vunpack.c.l.b16 %v792
    %v1427 = vunpack.c.h.b16 %v792
    %v1428 = vunpack.c.l.b16 %v793
    %v1429 = vunpack.c.h.b16 %v793
    %v1430 = vunpack.c.l.b16 %v794
    %v1431 = vunpack.c.l.b16 %v795
    %v1432 = vunpack.c.h.b16 %v795
    %v1433 = vunpack.c.l.b16 %v796
    %v1434 = vunpack.c.h.b16 %v796
    %v1435 = vunpack.c.l.b16 %v797
    %v1436 = vunpack.c.h.b16 %v797
    %v1437 = vunpack.c.l.b16 %v798
    %v1438 = vunpack.c.l.b16 %v799
    %v1439 = vunpack.c.h.b16 %v799
    %v1440 = vunpack.c.l.b16 %v800
    %v1441 = vunpack.c.h.b16 %v800
    %v1442 = vunpack.c.l.b16 %v801
    %v1443 = vunpack.c.h.b16 %v801
    %v1444 = vunpack.c.l.b16 %v802
    %v1445 = vunpack.c.l.b16 %v803
    %v1446 = vunpack.c.h.b16 %v803
    %v1447 = vunpack.c.l.b16 %v804
    %v1448 = vunpack.c.h.b16 %v804
    %v1449 = vunpack.c.l.b16 %v805
    %v1450 = vunpack.c.h.b16 %v805
    %v1451 = vunpack.c.l.b16 %v806
    %v1452 = vunpack.c.l.b16 %v807
    %v1453 = vunpack.c.h.b16 %v807
    %v1454 = vunpack.c.l.b16 %v808
    %v1455 = vunpack.c.h.b16 %v808
    %v1456 = vunpack.c.l.b16 %v809
    %v1457 = vunpack.c.h.b16 %v809
    %v1458 = vunpack.c.l.b16 %v810
    %v1459 = vunpack.c.l.b16 %v811
    %v1460 = vunpack.c.h.b16 %v811
    %v1461 = vunpack.c.l.b16 %v812
    %v1462 = vunpack.c.h.b16 %v812
    %v1463 = vunpack.c.l.b16 %v813
    %v1464 = vunpack.c.h.b16 %v813
    %v1465 = vunpack.c.l.b16 %v814
    %v1466 = vunpack.c.l.b16 %v815
    %v1467 = vunpack.c.h.b16 %v815
    %v1468 = vunpack.c.l.b16 %v816
    %v1469 = vunpack.c.h.b16 %v816
    %v1470 = vunpack.c.l.b16 %v817
    %v1471 = vunpack.c.h.b16 %v817
    %v1472 = vunpack.c.l.b16 %v818
    %v1473 = vunpack.c.l.b16 %v819
    %v1474 = vunpack.c.h.b16 %v819
    %v1475 = vunpack.c.l.b16 %v820
    %v1476 = vunpack.c.h.b16 %v820
    %v1477 = vunpack.c.l.b16 %v821
    %v1478 = vunpack.c.h.b16 %v821
    %v1479 = vunpack.c.l.b16 %v822
    %v1480 = vunpack.c.l.b16 %v823
    %v1481 = vunpack.c.h.b16 %v823
    %v1482 = vunpack.c.l.b16 %v824
    %v1483 = vunpack.c.h.b16 %v824
    %v1484 = vunpack.c.l.b16 %v825
    %v1485 = vunpack.c.h.b16 %v825
    %v1486 = vunpack.c.l.b16 %v826
    %v1487 = vunpack.c.l.b16 %v827
    %v1488 = vunpack.c.h.b16 %v827
    %v1489 = vunpack.c.l.b16 %v828
    %v1490 = vunpack.c.h.b16 %v828
    %v1491 = vunpack.c.l.b16 %v829
    %v1492 = vunpack.c.h.b16 %v829
    %v1493 = vunpack.c.l.b16 %v830
    %v1494 = vunpack.c.l.b16 %v831
    %v1495 = vunpack.c.h.b16 %v831
    %v1496 = vunpack.c.l.b16 %v832
    %v1497 = vunpack.c.h.b16 %v832
    %v1498 = vunpack.c.l.b16 %v833
    %v1499 = vunpack.c.h.b16 %v833
    %v1500 = vunpack.c.l.b16 %v834
    %v1501 = vunpack.c.l.b16 %v835
    %v1502 = vunpack.c.h.b16 %v835
    %v1503 = vunpack.c.l.b16 %v836
    %v1504 = vunpack.c.h.b16 %v836
    %v1505 = vunpack.c.l.b16 %v837
    %v1506 = vunpack.c.h.b16 %v837
    %v1507 = vunpack.c.l.b16 %v838
    %v1508 = vunpack.c.l.b16 %v839
    %v1509 = vunpack.c.h.b16 %v839
    %v1510 = vunpack.c.l.b16 %v840
    %v1511 = vunpack.c.h.b16 %v840
    %v1512 = vunpack.c.l.b16 %v841
    %v1513 = vunpack.c.h.b16 %v841
    %v1514 = vunpack.c.l.b16 %v842
    %v1515 = vunpack.c.l.b16 %v843
    %v1516 = vunpack.c.h.b16 %v843
    %v1517 = vunpack.c.l.b16 %v844
    %v1518 = vunpack.c.h.b16 %v844
    %v1519 = vunpack.c.l.b16 %v845
    %v1520 = vunpack.c.h.b16 %v845
    %v1521 = vunpack.c.l.b16 %v846
    %v1522 = vunpack.c.l.b16 %v847
    %v1523 = vunpack.c.h.b16 %v847
    %v1524 = vunpack.c.l.b16 %v848
    %v1525 = vunpack.c.h.b16 %v848
    %v1526 = vunpack.c.l.b16 %v849
    %v1527 = vunpack.c.h.b16 %v849
    %v1528 = vunpack.c.l.b16 %v850
    %v1529 = vunpack.c.l.b16 %v851
    %v1530 = vunpack.c.h.b16 %v851
    %v1531 = vunpack.c.l.b16 %v852
    %v1532 = vunpack.c.h.b16 %v852
    %v1533 = vunpack.c.l.b16 %v853
    %v1534 = vunpack.c.h.b16 %v853
    %v1535 = vunpack.c.l.b16 %v854
    %v1536 = vunpack.c.l.b16 %v855
    %v1537 = vunpack.c.h.b16 %v855
    %v1538 = vunpack.c.l.b16 %v856
    %v1539 = vunpack.c.h.b16 %v856
    %v1540 = vunpack.c.l.b16 %v857
    %v1541 = vunpack.c.h.b16 %v857
    %v1542 = vunpack.c.l.b16 %v858
    %v1543 = vunpack.c.l.b16 %v859
    %v1544 = vunpack.c.h.b16 %v859
    %v1545 = vunpack.c.l.b16 %v860
    %v1546 = vunpack.c.h.b16 %v860
    %v1547 = vunpack.c.l.b16 %v861
    %v1548 = vunpack.c.h.b16 %v861
    %v1549 = vunpack.c.l.b16 %v862
    %v1550 = vunpack.c.l.b16 %v863
    %v1551 = vunpack.c.h.b16 %v863
    %v1552 = vunpack.c.l.b16 %v864
    %v1553 = vunpack.c.h.b16 %v864
    %v1554 = vunpack.c.l.b16 %v865
    %v1555 = vunpack.c.h.b16 %v865
    %v1556 = vunpack.c.l.b16 %v866
    %v1557 = vunpack.c.l.b16 %v867
    %v1558 = vunpack.c.h.b16 %v867
    %v1559 = vunpack.c.l.b16 %v868
    %v1560 = vunpack.c.h.b16 %v868
    %v1561 = vunpack.c.l.b16 %v869
    %v1562 = vunpack.c.h.b16 %v869
    %v1563 = vunpack.c.l.b16 %v870
    %v1564 = vunpack.c.l.b16 %v871
    %v1565 = vunpack.c.h.b16 %v871
    %v1566 = vunpack.c.l.b16 %v872
    %v1567 = vunpack.c.h.b16 %v872
    %v1568 = vunpack.c.l.b16 %v873
    %v1569 = vunpack.c.h.b16 %v873
    %v1570 = vunpack.c.l.b16 %v874
    %v1571 = vunpack.c.l.b16 %v875
    %v1572 = vunpack.c.h.b16 %v875
    %v1573 = vunpack.c.l.b16 %v876
    %v1574 = vunpack.c.h.b16 %v876
    %v1575 = vunpack.c.l.b16 %v877
    %v1576 = vunpack.c.h.b16 %v877
    %v1577 = vunpack.c.l.b16 %v878
    %v1578 = vunpack.c.l.b16 %v879
    %v1579 = vunpack.c.h.b16 %v879
    %v1580 = vunpack.c.l.b16 %v880
    %v1581 = vunpack.c.h.b16 %v880
    %v1582 = vunpack.c.l.b16 %v881
    %v1583 = vunpack.c.h.b16 %v881
    %v1584 = vunpack.c.l.b16 %v882
    %v1585 = vunpack.c.l.b16 %v883
    %v1586 = vunpack.c.h.b16 %v883
    %v1587 = vunpack.c.l.b16 %v884
    %v1588 = vunpack.c.h.b16 %v884
    %v1589 = vunpack.c.l.b16 %v885
    %v1590 = vunpack.c.h.b16 %v885
    %v1591 = vunpack.c.l.b16 %v886
    %v1592 = vunpack.c.l.b16 %v887
    %v1593 = vunpack.c.h.b16 %v887
    %v1594 = vunpack.c.l.b16 %v888
    %v1595 = vunpack.c.h.b16 %v888
    %v1596 = vunpack.c.l.b16 %v889
    %v1597 = vunpack.c.h.b16 %v889
    %v1598 = vunpack.c.l.b16 %v890
    %v1599 = vunpack.c.l.b16 %v891
    %v1600 = vunpack.c.h.b16 %v891
    %v1601 = vunpack.c.l.b16 %v892
    %v1602 = vunpack.c.h.b16 %v892
    %v1603 = vunpack.c.l.b16 %v893
    %v1604 = vunpack.c.h.b16 %v893
    %v1605 = vunpack.c.l.b16 %v894
    %v1606 = vunpack.c.l.b16 %v895
    %v1607 = vunpack.c.h.b16 %v895
    %v1608 = vunpack.c.l.b16 %v896
    %v1609 = vunpack.c.h.b16 %v896
    %v1610 = vunpack.c.l.b16 %v897
    %v1611 = vunpack.c.h.b16 %v897
    %v1612 = vunpack.c.l.b16 %v898
    %v1613 = vunpack.c.l.b16 %v899
    %v1614 = vunpack.c.h.b16 %v899
    %v1615 = vunpack.c.l.b16 %v900
    %v1616 = vunpack.c.h.b16 %v900
    %v1617 = vunpack.c.l.b16 %v901
    %v1618 = vunpack.c.h.b16 %v901
    %v1619 = vunpack.c.l.b16 %v902
    %v1620 = vunpack.c.l.b16 %v903
    %v1621 = vunpack.c.h.b16 %v903
    %v1622 = vunpack.c.l.b16 %v904
    %v1623 = vunpack.c.h.b16 %v904
    %v1624 = vunpack.c.l.b16 %v905
    %v1625 = vunpack.c.h.b16 %v905
    %v1626 = vunpack.c.l.b16 %v906
    %v1627 = vunpack.c.l.b16 %v907
    %v1628 = vunpack.c.h.b16 %v907
    %v1629 = vunpack.c.l.b16 %v908
    %v1630 = vunpack.c.h.b16 %v908
    %v1631 = vunpack.c.l.b16 %v909
    %v1632 = vunpack.c.h.b16 %v909
    %v1633 = vunpack.c.l.b16 %v910
    %v1634 = vunpack.c.l.b16 %v911
    %v1635 = vunpack.c.h.b16 %v911
    %v1636 = vunpack.c.l.b16 %v912
    %v1637 = vunpack.c.h.b16 %v912
    %v1638 = vunpack.c.l.b16 %v913
    %v1639 = vunpack.c.h.b16 %v913
    %v1640 = vunpack.c.l.b16 %v914
    %v1641 = vunpack.c.l.b16 %v915
    %v1642 = vunpack.c.h.b16 %v915
    %v1643 = vunpack.c.l.b16 %v916
    %v1644 = vunpack.c.h.b16 %v916
    %v1645 = vunpack.c.l.b16 %v917
    %v1646 = vunpack.c.h.b16 %v917
    %v1647 = vunpack.c.l.b16 %v918
    %v1648 = vunpack.c.l.b16 %v919
    %v1649 = vunpack.c.h.b16 %v919
    %v1650 = vunpack.c.l.b16 %v920
    %v1651 = vunpack.c.h.b16 %v920
    %v1652 = vunpack.c.l.b16 %v921
    %v1653 = vunpack.c.h.b16 %v921
    %v1654 = vunpack.c.l.b16 %v922
    %v1655 = vunpack.c.l.b16 %v923
    %v1656 = vunpack.c.h.b16 %v923
    %v1657 = vunpack.c.l.b16 %v924
    %v1658 = vunpack.c.h.b16 %v924
    %v1659 = vunpack.c.l.b16 %v925
    %v1660 = vunpack.c.h.b16 %v925
    %v1661 = vunpack.c.l.b16 %v926
    %v1662 = vunpack.c.l.b16 %v927
    %v1663 = vunpack.c.h.b16 %v927
    %v1664 = vunpack.c.l.b16 %v928
    %v1665 = vunpack.c.h.b16 %v928
    %v1666 = vunpack.c.l.b16 %v929
    %v1667 = vunpack.c.h.b16 %v929
    %v1668 = vunpack.c.l.b16 %v930
    %v1669 = vunpack.c.l.b16 %v931
    %v1670 = vunpack.c.h.b16 %v931
    %v1671 = vunpack.c.l.b16 %v932
    %v1672 = vunpack.c.h.b16 %v932
    %v1673 = vunpack.c.l.b16 %v933
    %v1674 = vunpack.c.h.b16 %v933
    %v1675 = vunpack.c.l.b16 %v934
    %v1676 = vpack.c.b16 %v1235, %v1228
    %v1677 = vpack.c.b16 %v1236, %v1229
    %v1678 = vpack.c.b16 %v1237, %v1230
    %v1679 = vpack.c.b16 %v1238, %v1231
    %v1680 = vpack.c.b16 %v1239, %v1232
    %v1681 = vpack.c.b16 %v1240, %v1233
    %v1682 = vpack.c.b16 %v1241, %v1234
    %v1683 = vpack.c.b16 %v1249, %v1242
    %v1684 = vpack.c.b16 %v1250, %v1243
    %v1685 = vpack.c.b16 %v1251, %v1244
    %v1686 = vpack.c.b16 %v1252, %v1245
    %v1687 = vpack.c.b16 %v1253, %v1246
    %v1688 = vpack.c.b16 %v1254, %v1247
    %v1689 = vpack.c.b16 %v1255, %v1248
    %v1690 = vpack.c.b16 %v1263, %v1256
    %v1691 = vpack.c.b16 %v1264, %v1257
    %v1692 = vpack.c.b16 %v1265, %v1258
    %v1693 = vpack.c.b16 %v1266, %v1259
    %v1694 = vpack.c.b16 %v1267, %v1260
    %v1695 = vpack.c.b16 %v1268, %v1261
    %v1696 = vpack.c.b16 %v1269, %v1262
    %v1697 = vpack.c.b16 %v1277, %v1270
    %v1698 = vpack.c.b16 %v1278, %v1271
    %v1699 = vpack.c.b16 %v1279, %v1272
    %v1700 = vpack.c.b16 %v1280, %v1273
    %v1701 = vpack.c.b16 %v1281, %v1274
    %v1702 = vpack.c.b16 %v1282, %v1275
    %v1703 = vpack.c.b16 %v1283, %v1276
    %v1704 = vpack.c.b16 %v1291, %v1284
    %v1705 = vpack.c.b16 %v1292, %v1285
    %v1706 = vpack.c.b16 %v1293, %v1286
    %v1707 = vpack.c.b16 %v1294, %v1287
    %v1708 = vpack.c.b16 %v1295, %v1288
    %v1709 = vpack.c.b16 %v1296, %v1289
    %v1710 = vpack.c.b16 %v1297, %v1290
    %v1711 = vpack.c.b16 %v1305, %v1298
    %v1712 = vpack.c.b16 %v1306, %v1299
    %v1713 = vpack.c.b16 %v1307, %v1300
    %v1714 = vpack.c.b16 %v1308, %v1301
    %v1715 = vpack.c.b16 %v1309, %v1302
    %v1716 = vpack.c.b16 %v1310, %v1303
    %v1717 = vpack.c.b16 %v1311, %v1304
    %v1718 = vpack.c.b16 %v1319, %v1312
    %v1719 = vpack.c.b16 %v1320, %v1313
    %v1720 = vpack.c.b16 %v1321, %v1314
    %v1721 = vpack.c.b16 %v1322, %v1315
    %v1722 = vpack.c.b16 %v1323, %v1316
    %v1723 = vpack.c.b16 %v1324, %v1317
    %v1724 = vpack.c.b16 %v1325, %v1318
    %v1725 = vpack.c.b16 %v1333, %v1326
    %v1726 = vpack.c.b16 %v1334, %v1327
    %v1727 = vpack.c.b16 %v1335, %v1328
    %v1728 = vpack.c.b16 %v1336, %v1329
    %v1729 = vpack.c.b16 %v1337, %v1330
    %v1730 = vpack.c.b16 %v1338, %v1331
    %v1731 = vpack.c.b16 %v1339, %v1332
    %v1732 = vpack.c.b16 %v1347, %v1340
    %v1733 = vpack.c.b16 %v1348, %v1341
    %v1734 = vpack.c.b16 %v1349, %v1342
    %v1735 = vpack.c.b16 %v1350, %v1343
    %v1736 = vpack.c.b16 %v1351, %v1344
    %v1737 = vpack.c.b16 %v1352, %v1345
    %v1738 = vpack.c.b16 %v1353, %v1346
    %v1739 = vpack.c.b16 %v1361, %v1354
    %v1740 = vpack.c.b16 %v1362, %v1355
    %v1741 = vpack.c.b16 %v1363, %v1356
    %v1742 = vpack.c.b16 %v1364, %v1357
    %v1743 = vpack.c.b16 %v1365, %v1358
    %v1744 = vpack.c.b16 %v1366, %v1359
    %v1745 = vpack.c.b16 %v1367, %v1360
    %v1746 = vpack.c.b16 %v1375, %v1368
    %v1747 = vpack.c.b16 %v1376, %v1369
    %v1748 = vpack.c.b16 %v1377, %v1370
    %v1749 = vpack.c.b16 %v1378, %v1371
    %v1750 = vpack.c.b16 %v1379, %v1372
    %v1751 = vpack.c.b16 %v1380, %v1373
    %v1752 = vpack.c.b16 %v1381, %v1374
    %v1753 = vpack.c.b16 %v1389, %v1382
    %v1754 = vpack.c.b16 %v1390, %v1383
    %v1755 = vpack.c.b16 %v1391, %v1384
    %v1756 = vpack.c.b16 %v1392, %v1385
    %v1757 = vpack.c.b16 %v1393, %v1386
    %v1758 = vpack.c.b16 %v1394, %v1387
    %v1759 = vpack.c.b16 %v1395, %v1388
    %v1760 = vpack.c.b16 %v1403, %v1396
    %v1761 = vpack.c.b16 %v1404, %v1397
    %v1762 = vpack.c.b16 %v1405, %v1398
    %v1763 = vpack.c.b16 %v1406, %v1399
    %v1764 = vpack.c.b16 %v1407, %v1400
    %v1765 = vpack.c.b16 %v1408, %v1401
    %v1766 = vpack.c.b16 %v1409, %v1402
    %v1767 = vpack.c.b16 %v1417, %v1410
    %v1768 = vpack.c.b16 %v1418, %v1411
    %v1769 = vpack.c.b16 %v1419, %v1412
    %v1770 = vpack.c.b16 %v1420, %v1413
    %v1771 = vpack.c.b16 %v1421, %v1414
    %v1772 = vpack.c.b16 %v1422, %v1415
    %v1773 = vpack.c.b16 %v1423, %v1416
    %v1774 = vpack.c.b16 %v1431, %v1424
    %v1775 = vpack.c.b16 %v1432, %v1425
    %v1776 = vpack.c.b16 %v1433, %v1426
    %v1777 = vpack.c.b16 %v1434, %v1427
    %v1778 = vpack.c.b16 %v1435, %v1428
    %v1779 = vpack.c.b16 %v1436, %v1429
    %v1780 = vpack.c.b16 %v1437, %v1430
    %v1781 = vpack.c.b16 %v1445, %v1438
    %v1782 = vpack.c.b16 %v1446, %v1439
    %v1783 = vpack.c.b16 %v1447, %v1440
    %v1784 = vpack.c.b16 %v1448, %v1441
    %v1785 = vpack.c.b16 %v1449, %v1442
    %v1786 = vpack.c.b16 %v1450, %v1443
    %v1787 = vpack.c.b16 %v1451, %v1444
    %v1788 = vpack.c.b16 %v1459, %v1452
    %v1789 = vpack.c.b16 %v1460, %v1453
    %v1790 = vpack.c.b16 %v1461, %v1454
    %v1791 = vpack.c.b16 %v1462, %v1455
    %v1792 = vpack.c.b16 %v1463, %v1456
    %v1793 = vpack.c.b16 %v1464, %v1457
    %v1794 = vpack.c.b16 %v1465, %v1458
    %v1795 = vpack.c.b16 %v1473, %v1466
    %v1796 = vpack.c.b16 %v1474, %v1467
    %v1797 = vpack.c.b16 %v1475, %v1468
    %v1798 = vpack.c.b16 %v1476, %v1469
    %v1799 = vpack.c.b16 %v1477, %v1470
    %v1800 = vpack.c.b16 %v1478, %v1471
    %v1801 = vpack.c.b16 %v1479, %v1472
    %v1802 = vpack.c.b16 %v1487, %v1480
    %v1803 = vpack.c.b16 %v1488, %v1481
    %v1804 = vpack.c.b16 %v1489, %v1482
    %v1805 = vpack.c.b16 %v1490, %v1483
    %v1806 = vpack.c.b16 %v1491, %v1484
    %v1807 = vpack.c.b16 %v1492, %v1485
    %v1808 = vpack.c.b16 %v1493, %v1486
    %v1809 = vpack.c.b16 %v1501, %v1494
    %v1810 = vpack.c.b16 %v1502, %v1495
    %v1811 = vpack.c.b16 %v1503, %v1496
    %v1812 = vpack.c.b16 %v1504, %v1497
    %v1813 = vpack.c.b16 %v1505, %v1498
    %v1814 = vpack.c.b16 %v1506, %v1499
    %v1815 = vpack.c.b16 %v1507, %v1500
    %v1816 = vpack.c.b16 %v1515, %v1508
    %v1817 = vpack.c.b16 %v1516, %v1509
    %v1818 = vpack.c.b16 %v1517, %v1510
    %v1819 = vpack.c.b16 %v1518, %v1511
    %v1820 = vpack.c.b16 %v1519, %v1512
    %v1821 = vpack.c.b16 %v1520, %v1513
    %v1822 = vpack.c.b16 %v1521, %v1514
    %v1823 = vpack.c.b16 %v1529, %v1522
    %v1824 = vpack.c.b16 %v1530, %v1523
    %v1825 = vpack.c.b16 %v1531, %v1524
    %v1826 = vpack.c.b16 %v1532, %v1525
    %v1827 = vpack.c.b16 %v1533, %v1526
    %v1828 = vpack.c.b16 %v1534, %v1527
    %v1829 = vpack.c.b16 %v1535, %v1528
    %v1830 = vpack.c.b16 %v1543, %v1536
    %v1831 = vpack.c.b16 %v1544, %v1537
    %v1832 = vpack.c.b16 %v1545, %v1538
    %v1833 = vpack.c.b16 %v1546, %v1539
    %v1834 = vpack.c.b16 %v1547, %v1540
    %v1835 = vpack.c.b16 %v1548, %v1541
    %v1836 = vpack.c.b16 %v1549, %v1542
    %v1837 = vpack.c.b16 %v1557, %v1550
    %v1838 = vpack.c.b16 %v1558, %v1551
    %v1839 = vpack.c.b16 %v1559, %v1552
    %v1840 = vpack.c.b16 %v1560, %v1553
    %v1841 = vpack.c.b16 %v1561, %v1554
    %v1842 = vpack.c.b16 %v1562, %v1555
    %v1843 = vpack.c.b16 %v1563, %v1556
    %v1844 = vpack.c.b16 %v1571, %v1564
    %v1845 = vpack.c.b16 %v1572, %v1565
    %v1846 = vpack.c.b16 %v1573, %v1566
    %v1847 = vpack.c.b16 %v1574, %v1567
    %v1848 = vpack.c.b16 %v1575, %v1568
    %v1849 = vpack.c.b16 %v1576, %v1569
    %v1850 = vpack.c.b16 %v1577, %v1570
    %v1851 = vpack.c.b16 %v1585, %v1578
    %v1852 = vpack.c.b16 %v1586, %v1579
    %v1853 = vpack.c.b16 %v1587, %v1580
    %v1854 = vpack.c.b16 %v1588, %v1581
    %v1855 = vpack.c.b16 %v1589, %v1582
    %v1856 = vpack.c.b16 %v1590, %v1583
    %v1857 = vpack.c.b16 %v1591, %v1584
    %v1858 = vpack.c.b16 %v1599, %v1592
    %v1859 = vpack.c.b16 %v1600, %v1593
    %v1860 = vpack.c.b16 %v1601, %v1594
    %v1861 = vpack.c.b16 %v1602, %v1595
    %v1862 = vpack.c.b16 %v1603, %v1596
    %v1863 = vpack.c.b16 %v1604, %v1597
    %v1864 = vpack.c.b16 %v1605, %v1598
    %v1865 = vpack.c.b16 %v1613, %v1606
    %v1866 = vpack.c.b16 %v1614, %v1607
    %v1867 = vpack.c.b16 %v1615, %v1608
    %v1868 = vpack.c.b16 %v1616, %v1609
    %v1869 = vpack.c.b16 %v1617, %v1610
    %v1870 = vpack.c.b16 %v1618, %v1611
    %v1871 = vpack.c.b16 %v1619, %v1612
    %v1872 = vpack.c.b16 %v1627, %v1620
    %v1873 = vpack.c.b16 %v1628, %v1621
    %v1874 = vpack.c.b16 %v1629, %v1622
    %v1875 = vpack.c.b16 %v1630, %v1623
    %v1876 = vpack.c.b16 %v1631, %v1624
    %v1877 = vpack.c.b16 %v1632, %v1625
    %v1878 = vpack.c.b16 %v1633, %v1626
    %v1879 = vpack.c.b16 %v1641, %v1634
    %v1880 = vpack.c.b16 %v1642, %v1635
    %v1881 = vpack.c.b16 %v1643, %v1636
    %v1882 = vpack.c.b16 %v1644, %v1637
    %v1883 = vpack.c.b16 %v1645, %v1638
    %v1884 = vpack.c.b16 %v1646, %v1639
    %v1885 = vpack.c.b16 %v1647, %v1640
    %v1886 = vpack.c.b16 %v1655, %v1648
    %v1887 = vpack.c.b16 %v1656, %v1649
    %v1888 = vpack.c.b16 %v1657, %v1650
    %v1889 = vpack.c.b16 %v1658, %v1651
    %v1890 = vpack.c.b16 %v1659, %v1652
    %v1891 = vpack.c.b16 %v1660, %v1653
    %v1892 = vpack.c.b16 %v1661, %v1654
    %v1893 = vpack.c.b16 %v1669, %v1662
    %v1894 = vpack.c.b16 %v1670, %v1663
    %v1895 = vpack.c.b16 %v1671, %v1664
    %v1896 = vpack.c.b16 %v1672, %v1665
    %v1897 = vpack.c.b16 %v1673, %v1666
    %v1898 = vpack.c.b16 %v1674, %v1667
    %v1899 = vpack.c.b16 %v1675, %v1668
    %2124 = vmatprep.subr.bf16.mxu0 %v1677
    %2125 = vmatpush1.bf16.msra.mxu0 %v1676
    %2126 = vmatprep.subr.bf16.mxu0 %v1684
    %2127 = vmatpush1.bf16.msra.mxu0 %v1683
    %2128 = vmatprep.subr.bf16.mxu0 %v1691
    %2129 = vmatpush1.bf16.msra.mxu0 %v1690
    %2130 = vmatprep.subr.bf16.mxu0 %v1698
    %2131 = vmatpush1.bf16.msra.mxu0 %v1697
    %2132 = vmatprep.subr.bf16.mxu0 %v1705
    %2133 = vmatpush1.bf16.msra.mxu0 %v1704
    %2134 = vmatprep.subr.bf16.mxu0 %v1712
    %2135 = vmatpush1.bf16.msra.mxu0 %v1711
    %2136 = vmatprep.subr.bf16.mxu0 %v1719
    %2137 = vmatpush1.bf16.msra.mxu0 %v1718
    %2138 = vmatprep.subr.bf16.mxu0 %v1726
    %2139 = vmatpush1.bf16.msra.mxu0 %v1725
    %2140 = vmatprep.subr.bf16.mxu0 %v1733
    %2141 = vmatpush1.bf16.msra.mxu0 %v1732
    %2142 = vmatprep.subr.bf16.mxu0 %v1740
    %2143 = vmatpush1.bf16.msra.mxu0 %v1739
    %2144 = vmatprep.subr.bf16.mxu0 %v1747
    %2145 = vmatpush1.bf16.msra.mxu0 %v1746
    %2146 = vmatprep.subr.bf16.mxu0 %v1754
    %2147 = vmatpush1.bf16.msra.mxu0 %v1753
    %2148 = vmatprep.subr.bf16.mxu0 %v1761
    %2149 = vmatpush1.bf16.msra.mxu0 %v1760
    %2150 = vmatprep.subr.bf16.mxu0 %v1768
    %2151 = vmatpush1.bf16.msra.mxu0 %v1767
    %2152 = vmatprep.subr.bf16.mxu0 %v1775
    %2153 = vmatpush1.bf16.msra.mxu0 %v1774
    %2154 = vmatprep.subr.bf16.mxu0 %v1782
    %2155 = vmatpush1.bf16.msra.mxu0 %v1781
    %2156 = vmatprep.mubr.bf16.mxu0 %v676
    %2157 = vmatmul.mubr.bf16.gmra.mrb[0].mxu0 %v675
    %v2158 = vpop.f32.mrb[0].mxu0
    %v2159 = vadd.f32 %v940, %v2158
    %v2160 = vpop.f32.mrb[0].mxu0
    %v2161 = vadd.f32 %v944, %v2160
    %v2162 = vpop.f32.mrb[0].mxu0
    %v2163 = vadd.f32 %v940, %v2162
    %v2164 = vpop.f32.mrb[0].mxu0
    %v2165 = vadd.f32 %v944, %v2164
    %2166 = vdwg.mxu0
    %2167 = vmatprep.subr.bf16.mxu0 %v1789
    %2168 = vmatpush1.bf16.msra.mxu0 %v1788
    %2169 = vmatprep.subr.bf16.mxu0 %v1796
    %2170 = vmatpush1.bf16.msra.mxu0 %v1795
    %2171 = vmatprep.subr.bf16.mxu0 %v1803
    %2172 = vmatpush1.bf16.msra.mxu0 %v1802
    %2173 = vmatprep.subr.bf16.mxu0 %v1810
    %2174 = vmatpush1.bf16.msra.mxu0 %v1809
    %2175 = vmatprep.subr.bf16.mxu0 %v1817
    %2176 = vmatpush1.bf16.msra.mxu0 %v1816
    %2177 = vmatprep.subr.bf16.mxu0 %v1824
    %2178 = vmatpush1.bf16.msra.mxu0 %v1823
    %2179 = vmatprep.subr.bf16.mxu0 %v1831
    %2180 = vmatpush1.bf16.msra.mxu0 %v1830
    %2181 = vmatprep.subr.bf16.mxu0 %v1838
    %2182 = vmatpush1.bf16.msra.mxu0 %v1837
    %2183 = vmatprep.subr.bf16.mxu0 %v1845
    %2184 = vmatpush1.bf16.msra.mxu0 %v1844
    %2185 = vmatprep.subr.bf16.mxu0 %v1852
    %2186 = vmatpush1.bf16.msra.mxu0 %v1851
    %2187 = vmatprep.subr.bf16.mxu0 %v1859
    %2188 = vmatpush1.bf16.msra.mxu0 %v1858
    %2189 = vmatprep.subr.bf16.mxu0 %v1866
    %2190 = vmatpush1.bf16.msra.mxu0 %v1865
    %2191 = vmatprep.subr.bf16.mxu0 %v1873
    %2192 = vmatpush1.bf16.msra.mxu0 %v1872
    %2193 = vmatprep.subr.bf16.mxu0 %v1880
    %2194 = vmatpush1.bf16.msra.mxu0 %v1879
    %2195 = vmatprep.subr.bf16.mxu0 %v1887
    %2196 = vmatpush1.bf16.msra.mxu0 %v1886
    %2197 = vmatprep.subr.bf16.mxu0 %v1894
    %2198 = vmatpush1.bf16.msra.mxu0 %v1893
    %2199 = vmatprep.mubr.bf16.mxu0 %v678
    %2200 = vmatmul.mubr.bf16.gmra.mrb[0].mxu0 %v677
    %v2201 = vpop.f32.mrb[0].mxu0
    %v2202 = vadd.f32 %v2159, %v2201
    %v2203 = vpop.f32.mrb[0].mxu0
    %v2204 = vadd.f32 %v2161, %v2203
    %v2205 = vpop.f32.mrb[0].mxu0
    %v2206 = vadd.f32 %v2163, %v2205
    %v2207 = vpop.f32.mrb[0].mxu0
    %v2208 = vadd.f32 %v2165, %v2207
    %2209 = vdwg.mxu0
    %2210 = vmatprep.subr.bf16.mxu0 %v1679
    %2211 = vmatpush1.bf16.msra.mxu0 %v1678
    %2212 = vmatprep.subr.bf16.mxu0 %v1686
    %2213 = vmatpush1.bf16.msra.mxu0 %v1685
    %2214 = vmatprep.subr.bf16.mxu0 %v1693
    %2215 = vmatpush1.bf16.msra.mxu0 %v1692
    %2216 = vmatprep.subr.bf16.mxu0 %v1700
    %2217 = vmatpush1.bf16.msra.mxu0 %v1699
    %2218 = vmatprep.subr.bf16.mxu0 %v1707
    %2219 = vmatpush1.bf16.msra.mxu0 %v1706
    %2220 = vmatprep.subr.bf16.mxu0 %v1714
    %2221 = vmatpush1.bf16.msra.mxu0 %v1713
    %2222 = vmatprep.subr.bf16.mxu0 %v1721
    %2223 = vmatpush1.bf16.msra.mxu0 %v1720
    %2224 = vmatprep.subr.bf16.mxu0 %v1728
    %2225 = vmatpush1.bf16.msra.mxu0 %v1727
    %2226 = vmatprep.subr.bf16.mxu0 %v1735
    %2227 = vmatpush1.bf16.msra.mxu0 %v1734
    %2228 = vmatprep.subr.bf16.mxu0 %v1742
    %2229 = vmatpush1.bf16.msra.mxu0 %v1741
    %2230 = vmatprep.subr.bf16.mxu0 %v1749
    %2231 = vmatpush1.bf16.msra.mxu0 %v1748
    %2232 = vmatprep.subr.bf16.mxu0 %v1756
    %2233 = vmatpush1.bf16.msra.mxu0 %v1755
    %2234 = vmatprep.subr.bf16.mxu0 %v1763
    %2235 = vmatpush1.bf16.msra.mxu0 %v1762
    %2236 = vmatprep.subr.bf16.mxu0 %v1770
    %2237 = vmatpush1.bf16.msra.mxu0 %v1769
    %2238 = vmatprep.subr.bf16.mxu0 %v1777
    %2239 = vmatpush1.bf16.msra.mxu0 %v1776
    %2240 = vmatprep.subr.bf16.mxu0 %v1784
    %2241 = vmatpush1.bf16.msra.mxu0 %v1783
    %2242 = vmatprep.mubr.bf16.mxu0 %v676
    %2243 = vmatmul.mubr.bf16.gmra.mrb[0].mxu0 %v675
    %v2244 = vpop.f32.mrb[0].mxu0
    %v2245 = vadd.f32 %v948, %v2244
    %v2246 = vpop.f32.mrb[0].mxu0
    %v2247 = vadd.f32 %v952, %v2246
    %v2248 = vpop.f32.mrb[0].mxu0
    %v2249 = vadd.f32 %v948, %v2248
    %v2250 = vpop.f32.mrb[0].mxu0
    %v2251 = vadd.f32 %v952, %v2250
    %2252 = vdwg.mxu0
    %2253 = vmatprep.subr.bf16.mxu0 %v1791
    %2254 = vmatpush1.bf16.msra.mxu0 %v1790
    %2255 = vmatprep.subr.bf16.mxu0 %v1798
    %2256 = vmatpush1.bf16.msra.mxu0 %v1797
    %2257 = vmatprep.subr.bf16.mxu0 %v1805
    %2258 = vmatpush1.bf16.msra.mxu0 %v1804
    %2259 = vmatprep.subr.bf16.mxu0 %v1812
    %2260 = vmatpush1.bf16.msra.mxu0 %v1811
    %2261 = vmatprep.subr.bf16.mxu0 %v1819
    %2262 = vmatpush1.bf16.msra.mxu0 %v1818
    %2263 = vmatprep.subr.bf16.mxu0 %v1826
    %2264 = vmatpush1.bf16.msra.mxu0 %v1825
    %2265 = vmatprep.subr.bf16.mxu0 %v1833
    %2266 = vmatpush1.bf16.msra.mxu0 %v1832
    %2267 = vmatprep.subr.bf16.mxu0 %v1840
    %2268 = vmatpush1.bf16.msra.mxu0 %v1839
    %2269 = vmatprep.subr.bf16.mxu0 %v1847
    %2270 = vmatpush1.bf16.msra.mxu0 %v1846
    %2271 = vmatprep.subr.bf16.mxu0 %v1854
    %2272 = vmatpush1.bf16.msra.mxu0 %v1853
    %2273 = vmatprep.subr.bf16.mxu0 %v1861
    %2274 = vmatpush1.bf16.msra.mxu0 %v1860
    %2275 = vmatprep.subr.bf16.mxu0 %v1868
    %2276 = vmatpush1.bf16.msra.mxu0 %v1867
    %2277 = vmatprep.subr.bf16.mxu0 %v1875
    %2278 = vmatpush1.bf16.msra.mxu0 %v1874
    %2279 = vmatprep.subr.bf16.mxu0 %v1882
    %2280 = vmatpush1.bf16.msra.mxu0 %v1881
    %2281 = vmatprep.subr.bf16.mxu0 %v1889
    %2282 = vmatpush1.bf16.msra.mxu0 %v1888
    %2283 = vmatprep.subr.bf16.mxu0 %v1896
    %2284 = vmatpush1.bf16.msra.mxu0 %v1895
    %2285 = vmatprep.mubr.bf16.mxu0 %v678
    %2286 = vmatmul.mubr.bf16.gmra.mrb[0].mxu0 %v677
    %v2287 = vpop.f32.mrb[0].mxu0
    %v2288 = vadd.f32 %v2245, %v2287
    %v2289 = vpop.f32.mrb[0].mxu0
    %v2290 = vadd.f32 %v2247, %v2289
    %v2291 = vpop.f32.mrb[0].mxu0
    %v2292 = vadd.f32 %v2249, %v2291
    %v2293 = vpop.f32.mrb[0].mxu0
    %v2294 = vadd.f32 %v2251, %v2293
    %2295 = vdwg.mxu0
    %2296 = vmatprep.subr.bf16.mxu0 %v1681
    %2297 = vmatpush1.bf16.msra.mxu0 %v1680
    %2298 = vmatprep.subr.bf16.mxu0 %v1688
    %2299 = vmatpush1.bf16.msra.mxu0 %v1687
    %2300 = vmatprep.subr.bf16.mxu0 %v1695
    %2301 = vmatpush1.bf16.msra.mxu0 %v1694
    %2302 = vmatprep.subr.bf16.mxu0 %v1702
    %2303 = vmatpush1.bf16.msra.mxu0 %v1701
    %2304 = vmatprep.subr.bf16.mxu0 %v1709
    %2305 = vmatpush1.bf16.msra.mxu0 %v1708
    %2306 = vmatprep.subr.bf16.mxu0 %v1716
    %2307 = vmatpush1.bf16.msra.mxu0 %v1715
    %2308 = vmatprep.subr.bf16.mxu0 %v1723
    %2309 = vmatpush1.bf16.msra.mxu0 %v1722
    %2310 = vmatprep.subr.bf16.mxu0 %v1730
    %2311 = vmatpush1.bf16.msra.mxu0 %v1729
    %2312 = vmatprep.subr.bf16.mxu0 %v1737
    %2313 = vmatpush1.bf16.msra.mxu0 %v1736
    %2314 = vmatprep.subr.bf16.mxu0 %v1744
    %2315 = vmatpush1.bf16.msra.mxu0 %v1743
    %2316 = vmatprep.subr.bf16.mxu0 %v1751
    %2317 = vmatpush1.bf16.msra.mxu0 %v1750
    %2318 = vmatprep.subr.bf16.mxu0 %v1758
    %2319 = vmatpush1.bf16.msra.mxu0 %v1757
    %2320 = vmatprep.subr.bf16.mxu0 %v1765
    %2321 = vmatpush1.bf16.msra.mxu0 %v1764
    %2322 = vmatprep.subr.bf16.mxu0 %v1772
    %2323 = vmatpush1.bf16.msra.mxu0 %v1771
    %2324 = vmatprep.subr.bf16.mxu0 %v1779
    %2325 = vmatpush1.bf16.msra.mxu0 %v1778
    %2326 = vmatprep.subr.bf16.mxu0 %v1786
    %2327 = vmatpush1.bf16.msra.mxu0 %v1785
    %2328 = vmatprep.mubr.bf16.mxu0 %v676
    %2329 = vmatmul.mubr.bf16.gmra.mrb[0].mxu0 %v675
    %v2330 = vpop.f32.mrb[0].mxu0
    %v2331 = vadd.f32 %v956, %v2330
    %v2332 = vpop.f32.mrb[0].mxu0
    %v2333 = vadd.f32 %v960, %v2332
    %v2334 = vpop.f32.mrb[0].mxu0
    %v2335 = vadd.f32 %v956, %v2334
    %v2336 = vpop.f32.mrb[0].mxu0
    %v2337 = vadd.f32 %v960, %v2336
    %2338 = vdwg.mxu0
    %2339 = vmatprep.subr.bf16.mxu0 %v1793
    %2340 = vmatpush1.bf16.msra.mxu0 %v1792
    %2341 = vmatprep.subr.bf16.mxu0 %v1800
    %2342 = vmatpush1.bf16.msra.mxu0 %v1799
    %2343 = vmatprep.subr.bf16.mxu0 %v1807
    %2344 = vmatpush1.bf16.msra.mxu0 %v1806
    %2345 = vmatprep.subr.bf16.mxu0 %v1814
    %2346 = vmatpush1.bf16.msra.mxu0 %v1813
    %2347 = vmatprep.subr.bf16.mxu0 %v1821
    %2348 = vmatpush1.bf16.msra.mxu0 %v1820
    %2349 = vmatprep.subr.bf16.mxu0 %v1828
    %2350 = vmatpush1.bf16.msra.mxu0 %v1827
    %2351 = vmatprep.subr.bf16.mxu0 %v1835
    %2352 = vmatpush1.bf16.msra.mxu0 %v1834
    %2353 = vmatprep.subr.bf16.mxu0 %v1842
    %2354 = vmatpush1.bf16.msra.mxu0 %v1841
    %2355 = vmatprep.subr.bf16.mxu0 %v1849
    %2356 = vmatpush1.bf16.msra.mxu0 %v1848
    %2357 = vmatprep.subr.bf16.mxu0 %v1856
    %2358 = vmatpush1.bf16.msra.mxu0 %v1855
    %2359 = vmatprep.subr.bf16.mxu0 %v1863
    %2360 = vmatpush1.bf16.msra.mxu0 %v1862
    %2361 = vmatprep.subr.bf16.mxu0 %v1870
    %2362 = vmatpush1.bf16.msra.mxu0 %v1869
    %2363 = vmatprep.subr.bf16.mxu0 %v1877
    %2364 = vmatpush1.bf16.msra.mxu0 %v1876
    %2365 = vmatprep.subr.bf16.mxu0 %v1884
    %2366 = vmatpush1.bf16.msra.mxu0 %v1883
    %2367 = vmatprep.subr.bf16.mxu0 %v1891
    %2368 = vmatpush1.bf16.msra.mxu0 %v1890
    %2369 = vmatprep.subr.bf16.mxu0 %v1898
    %2370 = vmatpush1.bf16.msra.mxu0 %v1897
    %2371 = vmatprep.mubr.bf16.mxu0 %v678
    %2372 = vmatmul.mubr.bf16.gmra.mrb[0].mxu0 %v677
    %v2373 = vpop.f32.mrb[0].mxu0
    %v2374 = vadd.f32 %v2331, %v2373
    %v2375 = vpop.f32.mrb[0].mxu0
    %v2376 = vadd.f32 %v2333, %v2375
    %v2377 = vpop.f32.mrb[0].mxu0
    %v2378 = vadd.f32 %v2335, %v2377
    %v2379 = vpop.f32.mrb[0].mxu0
    %v2380 = vadd.f32 %v2337, %v2379
    %2381 = vdwg.mxu0
    %2382 = vmatprep.subr.bf16.mxu0 0
    %2383 = vmatpush1.bf16.msra.mxu0 %v1682
    %2384 = vmatprep.subr.bf16.mxu0 0
    %2385 = vmatpush1.bf16.msra.mxu0 %v1689
    %2386 = vmatprep.subr.bf16.mxu0 0
    %2387 = vmatpush1.bf16.msra.mxu0 %v1696
    %2388 = vmatprep.subr.bf16.mxu0 0
    %2389 = vmatpush1.bf16.msra.mxu0 %v1703
    %2390 = vmatprep.subr.bf16.mxu0 0
    %2391 = vmatpush1.bf16.msra.mxu0 %v1710
    %2392 = vmatprep.subr.bf16.mxu0 0
    %2393 = vmatpush1.bf16.msra.mxu0 %v1717
    %2394 = vmatprep.subr.bf16.mxu0 0
    %2395 = vmatpush1.bf16.msra.mxu0 %v1724
    %2396 = vmatprep.subr.bf16.mxu0 0
    %2397 = vmatpush1.bf16.msra.mxu0 %v1731
    %2398 = vmatprep.subr.bf16.mxu0 0
    %2399 = vmatpush1.bf16.msra.mxu0 %v1738
    %2400 = vmatprep.subr.bf16.mxu0 0
    %2401 = vmatpush1.bf16.msra.mxu0 %v1745
    %2402 = vmatprep.subr.bf16.mxu0 0
    %2403 = vmatpush1.bf16.msra.mxu0 %v1752
    %2404 = vmatprep.subr.bf16.mxu0 0
    %2405 = vmatpush1.bf16.msra.mxu0 %v1759
    %2406 = vmatprep.subr.bf16.mxu0 0
    %2407 = vmatpush1.bf16.msra.mxu0 %v1766
    %2408 = vmatprep.subr.bf16.mxu0 0
    %2409 = vmatpush1.bf16.msra.mxu0 %v1773
    %2410 = vmatprep.subr.bf16.mxu0 0
    %2411 = vmatpush1.bf16.msra.mxu0 %v1780
    %2412 = vmatprep.subr.bf16.mxu0 0
    %2413 = vmatpush1.bf16.msra.mxu0 %v1787
    %2414 = vmatprep.mubr.bf16.mxu0 %v676
    %2415 = vmatmul.mubr.bf16.gmra.mrb[0].mxu0 %v675
    %v2416 = vpop.f32.mrb[0].mxu0
    %v2417 = vadd.f32 %v964, %v2416
    %v2418 = vpop.f32.mrb[0].mxu0
    %v2419 = vpop.f32.mrb[0].mxu0
    %v2420 = vadd.f32 %v964, %v2419
    %v2421 = vpop.f32.mrb[0].mxu0
    %2422 = vdwg.mxu0
    %2423 = vmatprep.subr.bf16.mxu0 0
    %2424 = vmatpush1.bf16.msra.mxu0 %v1794
    %2425 = vmatprep.subr.bf16.mxu0 0
    %2426 = vmatpush1.bf16.msra.mxu0 %v1801
    %2427 = vmatprep.subr.bf16.mxu0 0
    %2428 = vmatpush1.bf16.msra.mxu0 %v1808
    %2429 = vmatprep.subr.bf16.mxu0 0
    %2430 = vmatpush1.bf16.msra.mxu0 %v1815
    %2431 = vmatprep.subr.bf16.mxu0 0
    %2432 = vmatpush1.bf16.msra.mxu0 %v1822
    %2433 = vmatprep.subr.bf16.mxu0 0
    %2434 = vmatpush1.bf16.msra.mxu0 %v1829
    %2435 = vmatprep.subr.bf16.mxu0 0
    %2436 = vmatpush1.bf16.msra.mxu0 %v1836
    %2437 = vmatprep.subr.bf16.mxu0 0
    %2438 = vmatpush1.bf16.msra.mxu0 %v1843
    %2439 = vmatprep.subr.bf16.mxu0 0
    %2440 = vmatpush1.bf16.msra.mxu0 %v1850
    %2441 = vmatprep.subr.bf16.mxu0 0
    %2442 = vmatpush1.bf16.msra.mxu0 %v1857
    %2443 = vmatprep.subr.bf16.mxu0 0
    %2444 = vmatpush1.bf16.msra.mxu0 %v1864
    %2445 = vmatprep.subr.bf16.mxu0 0
    %2446 = vmatpush1.bf16.msra.mxu0 %v1871
    %2447 = vmatprep.subr.bf16.mxu0 0
    %2448 = vmatpush1.bf16.msra.mxu0 %v1878
    %2449 = vmatprep.subr.bf16.mxu0 0
    %2450 = vmatpush1.bf16.msra.mxu0 %v1885
    %2451 = vmatprep.subr.bf16.mxu0 0
    %2452 = vmatpush1.bf16.msra.mxu0 %v1892
    %2453 = vmatprep.subr.bf16.mxu0 0
    %2454 = vmatpush1.bf16.msra.mxu0 %v1899
    %2455 = vmatprep.mubr.bf16.mxu0 %v678
    %2456 = vmatmul.mubr.bf16.gmra.mrb[0].mxu0 %v677
    %v2457 = vpop.f32.mrb[0].mxu0
    %v2458 = vadd.f32 %v2417, %v2457
    %v2459 = vpop.f32.mrb[0].mxu0
    %v2460 = vpop.f32.mrb[0].mxu0
    %v2461 = vadd.f32 %v2420, %v2460
    %v2462 = vpop.f32.mrb[0].mxu0
    %2463 = vdwg.mxu0
    %v2464 = vmul.f32 %v2202, 0.5
    %v2465 = vmul.f32 %v2204, 0.5
    %v2466 = vmul.f32 %v2288, 0.5
    %v2467 = vmul.f32 %v2290, 0.5
    %v2468 = vmul.f32 %v2374, 0.5
    %v2469 = vmul.f32 %v2376, 0.5
    %v2470 = vmul.f32 %v2458, 0.5
    %v2471 = vmul.f32 %v2206, 0.5
    %v2472 = vmul.f32 %v2208, 0.5
    %v2473 = vmul.f32 %v2292, 0.5
    %v2474 = vmul.f32 %v2294, 0.5
    %v2475 = vmul.f32 %v2378, 0.5
    %v2476 = vmul.f32 %v2380, 0.5
    %v2477 = vmul.f32 %v2461, 0.5
    %v2478 = vtanh.pop %v2464
    %v2479 = vtanh.pop %v2465
    %v2480 = vtanh.pop %v2466
    %v2481 = vtanh.pop %v2467
    %v2482 = vtanh.pop %v2468
    %v2483 = vtanh.pop %v2469
    %v2484 = vtanh.pop %v2470
    %v2485 = vtanh.pop %v2471
    %v2486 = vtanh.pop %v2472
    %v2487 = vtanh.pop %v2473
    %v2488 = vtanh.pop %v2474
    %v2489 = vtanh.pop %v2475
    %v2490 = vtanh.pop %v2476
    %v2491 = vtanh.pop %v2477
    %v2492 = vadd.f32 %v2478, 1.0
    %v2493 = vadd.f32 %v2479, 1.0
    %v2494 = vadd.f32 %v2480, 1.0
    %v2495 = vadd.f32 %v2481, 1.0
    %v2496 = vadd.f32 %v2482, 1.0
    %v2497 = vadd.f32 %v2483, 1.0
    %v2498 = vadd.f32 %v2484, 1.0
    %v2499 = vadd.f32 %v2485, 1.0
    %v2500 = vadd.f32 %v2486, 1.0
    %v2501 = vadd.f32 %v2487, 1.0
    %v2502 = vadd.f32 %v2488, 1.0
    %v2503 = vadd.f32 %v2489, 1.0
    %v2504 = vadd.f32 %v2490, 1.0
    %v2505 = vadd.f32 %v2491, 1.0
    %v2506 = vmul.f32 %v2492, 0.5
    %v2507 = vmul.f32 %v2493, 0.5
    %v2508 = vmul.f32 %v2494, 0.5
    %v2509 = vmul.f32 %v2495, 0.5
    %v2510 = vmul.f32 %v2496, 0.5
    %v2511 = vmul.f32 %v2497, 0.5
    %v2512 = vmul.f32 %v2498, 0.5
    %v2513 = vmul.f32 %v2499, 0.5
    %v2514 = vmul.f32 %v2500, 0.5
    %v2515 = vmul.f32 %v2501, 0.5
    %v2516 = vmul.f32 %v2502, 0.5
    %v2517 = vmul.f32 %v2503, 0.5
    %v2518 = vmul.f32 %v2504, 0.5
    %v2519 = vmul.f32 %v2505, 0.5
    %2520 = vst [vmem:[#allocation10] sm:$0xff] %v2506
    %2521 = vst [vmem:[#allocation10 + $0x8] sm:$0xff] %v2507
    %2522 = vst [vmem:[#allocation10 + $0x10] sm:$0xff] %v2508
    %2523 = vst [vmem:[#allocation10 + $0x18] sm:$0xff] %v2509
    %2524 = vst [vmem:[#allocation10 + $0x20] sm:$0xff] %v2510
    %2525 = vst [vmem:[#allocation10 + $0x28] sm:$0xff] %v2511
    %2526 = vst [vmem:[#allocation10 + $0x30] sm:$0xff] %v2512
    %2527 = vst [vmem:[#allocation10 + $0x38] sm:$0xff] %v2513
    %2528 = vst [vmem:[#allocation10 + $0x40] sm:$0xff] %v2514
    %2529 = vst [vmem:[#allocation10 + $0x48] sm:$0xff] %v2515
    %2530 = vst [vmem:[#allocation10 + $0x50] sm:$0xff] %v2516
    %2531 = vst [vmem:[#allocation10 + $0x58] sm:$0xff] %v2517
    %2532 = vst [vmem:[#allocation10 + $0x60] sm:$0xff] %v2518
    %2533 = vst [vmem:[#allocation10 + $0x68] sm:$0xff] %v2519
    // Predicated region
    $region46: #{tpu_custom_call.1} parent=1 // pred_check
      _
    $region47: #{tpu_custom_call.1} parent=1 // pred_check_branch
      %2535 = sbr.rel (0) target = $region49
    $region48: #{tpu_custom_call.1} parent=1 // pred_region
      %s2537 = ssub.s32 1792, 1792
      %2538 = vsyncadd [#allocation4], %s2537
      %s2539 = sshll.u32 [#allocation10], 4
      %s2540 = int_to_ptr.vmem [resolvable:$true] %s2539
      %2545 = dma.vmem_to_hbm [thread:$0]  %s2540, 1792, %s7, [#allocation4], 896, 896, 56
    $region49: #{tpu_custom_call.1} parent=1 // pred_fallthru
      _
    // Predicated region
    $region50: #{tpu_custom_call.1} parent=1 // pred_check
      _
    $region51: #{tpu_custom_call.1} parent=1 // pred_check_branch
      %2547 = sbr.rel (0) target = $region53
    $region52: #{tpu_custom_call.1} parent=1 // pred_region
      %2548 = dma.done [#allocation4], 1792
    $region53: #{tpu_custom_call.1} parent=1 // pred_fallthru
      _
    %2549 = vsyncpa [#allocation3], 1
    %2550 = vsyncpa [#allocation6], 1
    %2551 = vsyncpa [#allocation9], 1
    %2552 = vsyncpa [#allocation4], 1

</llo_original>
